<compile_context>
chip_gen: v6e
topology: v6e:2x2x1
jax: 0.10.0
libtpu: 0.0.40
codegen_flags: <defaults>
</compile_context>

<pallas_src>
import jax
import jax.numpy as jnp
from jax import lax
from jax.experimental import pallas as pl
from jax.experimental.pallas import tpu as pltpu


def _double_conv_kernel(xin_ref, w1_ref, b1_ref, w2_ref, b2_ref, o_ref,
                        xpt_ref, p1_ref, mpt_ref, p2_ref):
    # xin_ref : (1, H, W, Cin)        bf16 full (unpadded) NHWC input, one batch elem
    # w1_ref  : (9*Cin,  Cout)        bf16, BN1 scale folded, im2col row order
    # b1_ref  : (1, Cout)             f32 folded BN1 bias
    # w2_ref  : (9*Cout, Cout)        bf16, BN2 scale folded
    # b2_ref  : (1, Cout)             f32 folded BN2 bias
    # o_ref   : (1, R*W, Cout)        output rows [t*R, (t+1)*R), row idx = h*W + w
    # xpt_ref : (R+4, W+2, Cin)  f32  padded-input window, Xp rows [r0-1, r0+R+3)
    # p1_ref  : ((R+2)*W, 9*Cin) bf16 im2col patches, conv1 (R+2 mid rows incl. halo)
    # mpt_ref : (R+2, W+2, Cout) f32  padded mid tile, Mp rows [r0, r0+R+2)
    # p2_ref  : (R*W, 9*Cout)    bf16 im2col patches, conv2
    _, H, W, Cin = xin_ref.shape
    Cout = o_ref.shape[2]
    Rp4, Wp, _ = xpt_ref.shape
    R = Rp4 - 4          # output rows per tile
    Rm = R + 2           # mid rows computed per tile (1-row halo each side)

    t = pl.program_id(1)
    nt = pl.num_programs(1)
    r0 = t * R           # first output row of this tile

    # ---- stage the padded-input window for this row tile (f32) -------------
    # Left/right 1-column halo is always zero.
    zcol_in = jnp.zeros((Rp4, 1, Cin), jnp.float32)
    xpt_ref[:, 0:1, :] = zcol_in
    xpt_ref[:, Wp - 1:Wp, :] = zcol_in

    # Interior columns: copy input rows with a clamped row index.  Rows that
    # must be exactly zero (image top/bottom conv padding) are cleared below;
    # the two outermost window rows of the first/last tile are don't-care
    # (they only feed mid halo rows, which are overwritten with zeros).
    @pl.loop(0, Rp4)
    def _(j):
        q = r0 - 2 + j                       # source image row for window row j
        qc = jnp.clip(q, 0, H - 1)
        xpt_ref[j, 1:W + 1, :] = xin_ref[0, qc, :, :].astype(jnp.float32)

    zrow_in = jnp.zeros((W, Cin), jnp.float32)

    @pl.when(t == 0)                         # padded-image row 0 (top halo)
    def _():
        xpt_ref[1, 1:W + 1, :] = zrow_in

    @pl.when(t == nt - 1)                    # padded-image row H+1 (bottom halo)
    def _():
        xpt_ref[R + 2, 1:W + 1, :] = zrow_in

    # ---- conv1: im2col -> one MXU matmul (K = 9*Cin), bf16 patches ---------
    for dy in range(3):
        for dx in range(3):
            k = dy * 3 + dx
            slab = xpt_ref[dy:dy + Rm, dx:dx + W, :].reshape(Rm * W, Cin)
            p1_ref[:, k * Cin:(k + 1) * Cin] = slab.astype(jnp.bfloat16)

    acc1 = jnp.dot(p1_ref[...], w1_ref[...], preferred_element_type=jnp.float32)
    y = jnp.maximum(acc1 + b1_ref[...], 0.0)          # folded-BN bias + ReLU

    # ---- padded mid tile (Mp rows [r0, r0+R+2)) -----------------------------
    zcol_mid = jnp.zeros((Rm, 1, Cout), jnp.float32)
    mpt_ref[:, 0:1, :] = zcol_mid
    mpt_ref[:, Wp - 1:Wp, :] = zcol_mid
    mpt_ref[:, 1:W + 1, :] = y.reshape(Rm, W, Cout)

    zrow_mid = jnp.zeros((Wp, Cout), jnp.float32)

    @pl.when(t == 0)                         # Mp row 0 is the zero halo
    def _():
        mpt_ref[0, :, :] = zrow_mid

    @pl.when(t == nt - 1)                    # Mp row H+1 is the zero halo
    def _():
        mpt_ref[Rm - 1, :, :] = zrow_mid

    # ---- conv2: im2col -> one MXU matmul (K = 9*Cout), bf16 patches --------
    for dy in range(3):
        for dx in range(3):
            k = dy * 3 + dx
            slab = mpt_ref[dy:dy + R, dx:dx + W, :].reshape(R * W, Cout)
            p2_ref[:, k * Cout:(k + 1) * Cout] = slab.astype(jnp.bfloat16)

    acc2 = jnp.dot(p2_ref[...], w2_ref[...], preferred_element_type=jnp.float32)
    z = jnp.maximum(acc2 + b2_ref[...], 0.0)
    o_ref[0] = z.astype(o_ref.dtype)


# ------------------------------ wrapper ------------------------------------

def _fold_bn(w, gamma, beta, mean, var, eps):
    """Fold eval-mode BN into conv weights (HWIO) -> (9*Cin, Cout) bf16 + bias."""
    inv = gamma / jnp.sqrt(var + eps)
    kh, kw, cin, cout = w.shape
    wf = (w * inv).reshape(kh * kw * cin, cout).astype(jnp.bfloat16)
    bf = (beta - mean * inv).reshape(1, cout).astype(jnp.float32)
    return wf, bf


def _step_vmem_bytes(R, H, W, Cin, Cout, out_itemsize):
    """Rough per-grid-step VMEM bytes: scratch + double-buffered blocks."""
    Wp = W + 2
    scratch = ((R + 4) * Wp * Cin * 4           # xpt (f32)
               + (R + 2) * W * 9 * Cin * 2      # p1  (bf16)
               + (R + 2) * Wp * Cout * 4        # mpt (f32)
               + R * W * 9 * Cout * 2)          # p2  (bf16)
    blocks = 2 * (H * W * Cin * 2               # input block (bf16)
                  + R * W * Cout * out_itemsize)  # output block
    weights = 2 * (9 * Cin * Cout * 2 + 9 * Cout * Cout * 2 + 2 * Cout * 4)
    return scratch + blocks + weights


def _pick_rows_per_tile(H, W, Cin, Cout, out_itemsize, budget):
    """Largest divisor R of H (R>=2) whose per-step working set fits `budget`."""
    fallback = H
    for R in range(H, 1, -1):
        if H % R != 0:
            continue
        if (R * W) % 8 != 0 and R != H:   # (8,128) constraint on the out block
            continue
        fallback = R
        if _step_vmem_bytes(R, H, W, Cin, Cout, out_itemsize) <= budget:
            return R
    return fallback


def double_conv_nhwc(x_nhwc, w1, g1, b1, m1, v1, w2, g2, b2, m2, v2, *,
                     eps=1e-5, out_dtype=jnp.float32, rows_per_tile=None):
    """x_nhwc: (N, H, W, Cin) float32.  Weights HWIO.  Returns (N, H, W, Cout)."""
    N, H, W, Cin = x_nhwc.shape
    Cout = w1.shape[-1]
    Wp = W + 2
    out_itemsize = int(jnp.dtype(out_dtype).itemsize)

    # Generation-aware VMEM budget (v7x: 64 MiB/TC, v5e/v6e: 128 MiB).
    try:
        info = pltpu.get_tpu_info()
        vmem_cap = int(getattr(info, "vmem_capacity_bytes", 64 * 1024 * 1024))
    except Exception:
        vmem_cap = 64 * 1024 * 1024
    vmem_limit = min((vmem_cap * 3) // 4, 100 * 1024 * 1024)

    if rows_per_tile is None:
        rows_per_tile = _pick_rows_per_tile(H, W, Cin, Cout, out_itemsize,
                                            int(vmem_limit * 0.7))
    R = int(rows_per_tile)
    assert H % R == 0, "rows_per_tile must divide H"
    assert R >= 2 or R == H, "rows_per_tile must be >= 2 (halo correctness)"
    T = H // R

    # bf16 input, no wrapper-side spatial pad (halo is built in-kernel).
    x = x_nhwc.astype(jnp.bfloat16)

    w1f, b1f = _fold_bn(w1, g1, b1, m1, v1, eps)
    w2f, b2f = _fold_bn(w2, g2, b2, m2, v2, eps)

    flops = 2 * N * H * W * 9 * (Cin * Cout + Cout * Cout)
    bytes_accessed = (N * H * W * Cin * 2
                      + N * H * W * Cout * out_itemsize
                      + 9 * Cin * Cout * 2 + 9 * Cout * Cout * 2
                      + 2 * 2 * Cout * 4)

    out_flat = pl.pallas_call(
        _double_conv_kernel,
        out_shape=jax.ShapeDtypeStruct((N, H * W, Cout), out_dtype),
        grid_spec=pltpu.PrefetchScalarGridSpec(
            num_scalar_prefetch=0,
            grid=(N, T),
            in_specs=[
                # Full image per batch elem; block index is constant across the
                # row-tile axis, so it is fetched once per batch element.
                pl.BlockSpec((1, H, W, Cin), lambda n, t: (n, 0, 0, 0)),
                pl.BlockSpec((9 * Cin, Cout), lambda n, t: (0, 0)),
                pl.BlockSpec((1, Cout), lambda n, t: (0, 0)),
                pl.BlockSpec((9 * Cout, Cout), lambda n, t: (0, 0)),
                pl.BlockSpec((1, Cout), lambda n, t: (0, 0)),
            ],
            out_specs=pl.BlockSpec((1, R * W, Cout), lambda n, t: (n, t, 0)),
            scratch_shapes=[
                pltpu.VMEM((R + 4, Wp, Cin), jnp.float32),        # padded input tile
                pltpu.VMEM(((R + 2) * W, 9 * Cin), jnp.bfloat16),  # im2col conv1
                pltpu.VMEM((R + 2, Wp, Cout), jnp.float32),       # padded mid tile
                pltpu.VMEM((R * W, 9 * Cout), jnp.bfloat16),      # im2col conv2
            ],
        ),
        compiler_params=pltpu.CompilerParams(
            dimension_semantics=("parallel", "parallel"),
            vmem_limit_bytes=int(vmem_limit),
        ),
        cost_estimate=pl.CostEstimate(flops=flops, transcendentals=0,
                                      bytes_accessed=bytes_accessed),
    )(x, w1f, b1f, w2f, b2f)

    return out_flat.reshape(N, H, W, Cout)


def double_conv(x_nchw, w1, g1, b1, m1, v1, w2, g2, b2, m2, v2, *,
                eps=1e-5, out_dtype=jnp.float32, rows_per_tile=None):
    """PyTorch-layout convenience wrapper: (N, Cin, H, W) -> (N, Cout, H, W)."""
    # TODO(synk): keep the model NHWC end-to-end to drop these two transposes.
    x_nhwc = jnp.transpose(x_nchw, (0, 2, 3, 1))
    y = double_conv_nhwc(x_nhwc, w1, g1, b1, m1, v1, w2, g2, b2, m2, v2,
                         eps=eps, out_dtype=out_dtype, rows_per_tile=rows_per_tile)
    return jnp.transpose(y, (0, 3, 1, 2))


# ----------------------------- references ----------------------------------

def _reference_f32(x_nchw, w1, g1, b1, m1, v1, w2, g2, b2, m2, v2, eps=1e-5):
    """Pure float32 reference of the PyTorch module (eval-mode BN)."""
    x = jnp.transpose(x_nchw, (0, 2, 3, 1))
    dn = ('NHWC', 'HWIO', 'NHWC')
    hp = lax.Precision.HIGHEST
    y = lax.conv_general_dilated(x, w1, (1, 1), 'SAME', dimension_numbers=dn,
                                 precision=hp)
    y = (y - m1) / jnp.sqrt(v1 + eps) * g1 + b1
    y = jnp.maximum(y, 0.0)
    z = lax.conv_general_dilated(y, w2, (1, 1), 'SAME', dimension_numbers=dn,
                                 precision=hp)
    z = (z - m2) / jnp.sqrt(v2 + eps) * g2 + b2
    z = jnp.maximum(z, 0.0)
    return jnp.transpose(z, (0, 3, 1, 2))


def _reference_bf16(x_nchw, w1, g1, b1, m1, v1, w2, g2, b2, m2, v2, eps=1e-5):
    """Reference with the kernel's precision policy (bf16 inputs/weights/mid,
    f32 accumulation, BN folded into weights)."""
    def q(a):
        return a.astype(jnp.bfloat16).astype(jnp.float32)

    x = q(jnp.transpose(x_nchw, (0, 2, 3, 1)))
    dn = ('NHWC', 'HWIO', 'NHWC')
    hp = lax.Precision.HIGHEST
    inv1 = g1 / jnp.sqrt(v1 + eps)
    inv2 = g2 / jnp.sqrt(v2 + eps)
    w1q, b1q = q(w1 * inv1), b1 - m1 * inv1
    w2q, b2q = q(w2 * inv2), b2 - m2 * inv2

    y = lax.conv_general_dilated(x, w1q, (1, 1), 'SAME', dimension_numbers=dn,
                                 precision=hp) + b1q
    y = q(jnp.maximum(y, 0.0))                      # mid re-quantized to bf16
    z = lax.conv_general_dilated(y, w2q, (1, 1), 'SAME', dimension_numbers=dn,
                                 precision=hp) + b2q
    z = jnp.maximum(z, 0.0)
    return jnp.transpose(z, (0, 3, 1, 2))


if __name__ == "__main__":
    N, Cin, Cout, H, W = 2, 4, 8, 16, 16

    key = jax.random.PRNGKey(0)
    keys = jax.random.split(key, 11)

    x = jax.random.normal(keys[0], (N, Cin, H, W), jnp.float32)

    # conv weights (HWIO) and BN parameters — deterministic synthetic init
    w1 = jax.random.normal(keys[1], (3, 3, Cin, Cout), jnp.float32) * 0.1
    w2 = jax.random.normal(keys[2], (3, 3, Cout, Cout), jnp.float32) * 0.1
    g1 = jax.random.uniform(keys[3], (Cout,), jnp.float32, 0.5, 1.5)
    b1 = jax.random.normal(keys[4], (Cout,), jnp.float32) * 0.1
    m1 = jax.random.normal(keys[5], (Cout,), jnp.float32) * 0.1
    v1 = jax.random.uniform(keys[6], (Cout,), jnp.float32, 0.5, 1.5)
    g2 = jax.random.uniform(keys[7], (Cout,), jnp.float32, 0.5, 1.5)
    b2 = jax.random.normal(keys[8], (Cout,), jnp.float32) * 0.1
    m2 = jax.random.normal(keys[9], (Cout,), jnp.float32) * 0.1
    v2 = jax.random.uniform(keys[10], (Cout,), jnp.float32, 0.5, 1.5)

    # Run with an explicit 4-row tile (4 tiles / batch elem) so the first /
    # interior / last halo paths at tile seams are all exercised.
    out = double_conv(x, w1, g1, b1, m1, v1, w2, g2, b2, m2, v2,
                      rows_per_tile=4)
    out = jax.block_until_ready(out)
    assert out.shape == (N, Cout, H, W)

    # Exact-policy check (same bf16 quantization as the kernel): should be ~1e-6.
    ref_q = _reference_bf16(x, w1, g1, b1, m1, v1, w2, g2, b2, m2, v2)
    err_q = float(jnp.max(jnp.abs(out - ref_q)))
    assert err_q < 1e-3, f"mismatch vs same-precision reference: {err_q}"

    # Sanity check against the full-f32 reference (bound reflects bf16 matmuls).
    ref_f = _reference_f32(x, w1, g1, b1, m1, v1, w2, g2, b2, m2, v2)
    err_f = float(jnp.max(jnp.abs(out - ref_f)))
    assert err_f < 0.2, f"bf16-vs-f32 sanity bound exceeded: {err_f}"

    # bf16-output variant with automatic row-tile / VMEM-budget selection
    # (exercises the generation-aware path and the halved output writeback).
    out_bf = double_conv(x, w1, g1, b1, m1, v1, w2, g2, b2, m2, v2,
                         out_dtype=jnp.bfloat16)
    out_bf = jax.block_until_ready(out_bf)
    err_b = float(jnp.max(jnp.abs(out_bf.astype(jnp.float32) - ref_q)))
    assert err_b < 5e-2, f"bf16-output mismatch: {err_b}"

    print("KERNEL_OK")
</pallas_src>

<mosaic_0001>
module attributes {stable_mosaic.version = 11 : i64} {
  func.func @_double_conv_kernel(%arg0: i32, %arg1: i32, %arg2: memref<1x16x16x4xbf16, #tpu.memory_space<vmem>>, %arg3: memref<36x8xbf16, #tpu.memory_space<vmem>>, %arg4: memref<1x8xf32, #tpu.memory_space<vmem>>, %arg5: memref<72x8xbf16, #tpu.memory_space<vmem>>, %arg6: memref<1x8xf32, #tpu.memory_space<vmem>>, %arg7: memref<1x64x8xf32, #tpu.memory_space<vmem>>, %arg8: memref<8x18x4xf32, #tpu.memory_space<vmem>>, %arg9: memref<96x36xbf16, #tpu.memory_space<vmem>>, %arg10: memref<6x18x8xf32, #tpu.memory_space<vmem>>, %arg11: memref<64x72xbf16, #tpu.memory_space<vmem>>) attributes {dimension_semantics = [#tpu.dimension_semantics<parallel>, #tpu.dimension_semantics<parallel>], iteration_bounds = array<i64: 2, 4>, scalar_prefetch = 0 : i64, scratch_operands = 4 : i64, tpu.core_type = #tpu.core_type<tc>, window_params = [{transform_indices = @transform_0, window_bounds = array<i64: 1, 16, 16, 4>}, {pipeline_mode = #tpu.pipeline_mode<synchronous>, transform_indices = @transform_1, window_bounds = array<i64: 36, 8>}, {pipeline_mode = #tpu.pipeline_mode<synchronous>, transform_indices = @transform_2, window_bounds = array<i64: 1, 8>}, {pipeline_mode = #tpu.pipeline_mode<synchronous>, transform_indices = @transform_3, window_bounds = array<i64: 72, 8>}, {pipeline_mode = #tpu.pipeline_mode<synchronous>, transform_indices = @transform_4, window_bounds = array<i64: 1, 8>}, {transform_indices = @transform_5, window_bounds = array<i64: 1, 64, 8>}]} {
    %c4_i32 = arith.constant 4 : i32
    %0 = arith.muli %arg1, %c4_i32 : i32
    %cst = arith.constant 0.000000e+00 : f32
    %1 = vector.broadcast %cst : f32 to vector<8x1x4xf32>
    %c0 = arith.constant 0 : index
    %c0_0 = arith.constant 0 : index
    %c0_1 = arith.constant 0 : index
    %2 = vector.load %arg8[%c0, %c0_0, %c0_1] : memref<8x18x4xf32, #tpu.memory_space<vmem>>, vector<8x1x4xf32>
    tpu.vector_store %arg8[%c0, %c0_0, %c0_1], %1 {strides = array<i32>} : memref<8x18x4xf32, #tpu.memory_space<vmem>>, vector<8x1x4xf32>,
    %c0_2 = arith.constant 0 : index
    %c17 = arith.constant 17 : index
    %c0_3 = arith.constant 0 : index
    %3 = vector.load %arg8[%c0_2, %c17, %c0_3] : memref<8x18x4xf32, #tpu.memory_space<vmem>>, vector<8x1x4xf32>
    tpu.vector_store %arg8[%c0_2, %c17, %c0_3], %1 {strides = array<i32>} : memref<8x18x4xf32, #tpu.memory_space<vmem>>, vector<8x1x4xf32>,
    %c0_i32 = arith.constant 0 : i32
    %c8_i32 = arith.constant 8 : i32
    %4 = arith.addi %c0_i32, %c8_i32 : i32
    %c1_i32 = arith.constant 1 : i32
    scf.for %arg12 = %c0_i32 to %4 step %c1_i32  : i32 {
      %c1_i32_119 = arith.constant 1 : i32
      %115 = arith.muli %arg12, %c1_i32_119 : i32
      %c0_i32_120 = arith.constant 0 : i32
      %116 = arith.addi %c0_i32_120, %115 : i32
      %c2_i32 = arith.constant 2 : i32
      %117 = arith.subi %0, %c2_i32 : i32
      %118 = arith.addi %117, %116 : i32
      %c0_i32_121 = arith.constant 0 : i32
      %c15_i32 = arith.constant 15 : i32
      %119 = arith.maxsi %c0_i32_121, %118 : i32
      %120 = arith.minsi %c15_i32, %119 : i32
      %c0_122 = arith.constant 0 : index
      %121 = arith.index_cast %120 : i32 to index
      %c0_123 = arith.constant 0 : index
      %c0_124 = arith.constant 0 : index
      %122 = vector.load %arg2[%c0_122, %121, %c0_123, %c0_124] : memref<1x16x16x4xbf16, #tpu.memory_space<vmem>>, vector<1x1x16x4xbf16>
      %123 = vector.shape_cast %122 : vector<1x1x16x4xbf16> to vector<16x4xbf16>
      %124 = arith.extf %123 : vector<16x4xbf16> to vector<16x4xf32>
      %125 = arith.index_cast %116 : i32 to index
      %c1_125 = arith.constant 1 : index
      %c0_126 = arith.constant 0 : index
      %126 = vector.load %arg8[%125, %c1_125, %c0_126] : memref<8x18x4xf32, #tpu.memory_space<vmem>>, vector<1x16x4xf32>
      %127 = vector.shape_cast %126 : vector<1x16x4xf32> to vector<16x4xf32>
      %128 = vector.shape_cast %124 : vector<16x4xf32> to vector<1x16x4xf32>
      tpu.vector_store %arg8[%125, %c1_125, %c0_126], %128 {strides = array<i32>} : memref<8x18x4xf32, #tpu.memory_space<vmem>>, vector<1x16x4xf32>,
    }
    %c8_i32_4 = arith.constant 8 : i32
    %cst_5 = arith.constant 0.000000e+00 : f32
    %5 = vector.broadcast %cst_5 : f32 to vector<16x4xf32>
    %c0_i32_6 = arith.constant 0 : i32
    %6 = arith.cmpi eq, %arg1, %c0_i32_6 : i32
    %7 = arith.extui %6 : i1 to i32
    %c0_i32_7 = arith.constant 0 : i32
    %8 = arith.cmpi ne, %7, %c0_i32_7 : i32
    scf.if %8 {
      %c1_119 = arith.constant 1 : index
      %c1_120 = arith.constant 1 : index
      %c0_121 = arith.constant 0 : index
      %115 = vector.load %arg8[%c1_119, %c1_120, %c0_121] : memref<8x18x4xf32, #tpu.memory_space<vmem>>, vector<1x16x4xf32>
      %116 = vector.shape_cast %115 : vector<1x16x4xf32> to vector<16x4xf32>
      %117 = vector.shape_cast %5 : vector<16x4xf32> to vector<1x16x4xf32>
      tpu.vector_store %arg8[%c1_119, %c1_120, %c0_121], %117 {strides = array<i32>} : memref<8x18x4xf32, #tpu.memory_space<vmem>>, vector<1x16x4xf32>,
    } else {
    }
    %c3_i32 = arith.constant 3 : i32
    %9 = arith.cmpi eq, %arg1, %c3_i32 : i32
    %10 = arith.extui %9 : i1 to i32
    %c0_i32_8 = arith.constant 0 : i32
    %11 = arith.cmpi ne, %10, %c0_i32_8 : i32
    scf.if %11 {
      %c6 = arith.constant 6 : index
      %c1_119 = arith.constant 1 : index
      %c0_120 = arith.constant 0 : index
      %115 = vector.load %arg8[%c6, %c1_119, %c0_120] : memref<8x18x4xf32, #tpu.memory_space<vmem>>, vector<1x16x4xf32>
      %116 = vector.shape_cast %115 : vector<1x16x4xf32> to vector<16x4xf32>
      %117 = vector.shape_cast %5 : vector<16x4xf32> to vector<1x16x4xf32>
      tpu.vector_store %arg8[%c6, %c1_119, %c0_120], %117 {strides = array<i32>} : memref<8x18x4xf32, #tpu.memory_space<vmem>>, vector<1x16x4xf32>,
    } else {
    }
    %c0_9 = arith.constant 0 : index
    %c0_10 = arith.constant 0 : index
    %c0_11 = arith.constant 0 : index
    %12 = vector.load %arg8[%c0_9, %c0_10, %c0_11] : memref<8x18x4xf32, #tpu.memory_space<vmem>>, vector<6x16x4xf32>
    %13 = vector.shape_cast %12 : vector<6x16x4xf32> to vector<96x4xf32>
    %14 = arith.truncf %13 : vector<96x4xf32> to vector<96x4xbf16>
    %c0_12 = arith.constant 0 : index
    %c0_13 = arith.constant 0 : index
    %15 = vector.load %arg9[%c0_12, %c0_13] : memref<96x36xbf16, #tpu.memory_space<vmem>>, vector<96x4xbf16>
    tpu.vector_store %arg9[%c0_12, %c0_13], %14 {strides = array<i32>} : memref<96x36xbf16, #tpu.memory_space<vmem>>, vector<96x4xbf16>,
    %c0_14 = arith.constant 0 : index
    %c1 = arith.constant 1 : index
    %c0_15 = arith.constant 0 : index
    %16 = vector.load %arg8[%c0_14, %c1, %c0_15] : memref<8x18x4xf32, #tpu.memory_space<vmem>>, vector<6x16x4xf32>
    %17 = vector.shape_cast %16 : vector<6x16x4xf32> to vector<96x4xf32>
    %18 = arith.truncf %17 : vector<96x4xf32> to vector<96x4xbf16>
    %c0_16 = arith.constant 0 : index
    %c4 = arith.constant 4 : index
    %19 = vector.load %arg9[%c0_16, %c4] : memref<96x36xbf16, #tpu.memory_space<vmem>>, vector<96x4xbf16>
    tpu.vector_store %arg9[%c0_16, %c4], %18 {strides = array<i32>} : memref<96x36xbf16, #tpu.memory_space<vmem>>, vector<96x4xbf16>,
    %c0_17 = arith.constant 0 : index
    %c2 = arith.constant 2 : index
    %c0_18 = arith.constant 0 : index
    %20 = vector.load %arg8[%c0_17, %c2, %c0_18] : memref<8x18x4xf32, #tpu.memory_space<vmem>>, vector<6x16x4xf32>
    %21 = vector.shape_cast %20 : vector<6x16x4xf32> to vector<96x4xf32>
    %22 = arith.truncf %21 : vector<96x4xf32> to vector<96x4xbf16>
    %c0_19 = arith.constant 0 : index
    %c8 = arith.constant 8 : index
    %23 = vector.load %arg9[%c0_19, %c8] : memref<96x36xbf16, #tpu.memory_space<vmem>>, vector<96x4xbf16>
    tpu.vector_store %arg9[%c0_19, %c8], %22 {strides = array<i32>} : memref<96x36xbf16, #tpu.memory_space<vmem>>, vector<96x4xbf16>,
    %c1_20 = arith.constant 1 : index
    %c0_21 = arith.constant 0 : index
    %c0_22 = arith.constant 0 : index
    %24 = vector.load %arg8[%c1_20, %c0_21, %c0_22] : memref<8x18x4xf32, #tpu.memory_space<vmem>>, vector<6x16x4xf32>
    %25 = vector.shape_cast %24 : vector<6x16x4xf32> to vector<96x4xf32>
    %26 = arith.truncf %25 : vector<96x4xf32> to vector<96x4xbf16>
    %c0_23 = arith.constant 0 : index
    %c12 = arith.constant 12 : index
    %27 = vector.load %arg9[%c0_23, %c12] : memref<96x36xbf16, #tpu.memory_space<vmem>>, vector<96x4xbf16>
    tpu.vector_store %arg9[%c0_23, %c12], %26 {strides = array<i32>} : memref<96x36xbf16, #tpu.memory_space<vmem>>, vector<96x4xbf16>,
    %c1_24 = arith.constant 1 : index
    %c1_25 = arith.constant 1 : index
    %c0_26 = arith.constant 0 : index
    %28 = vector.load %arg8[%c1_24, %c1_25, %c0_26] : memref<8x18x4xf32, #tpu.memory_space<vmem>>, vector<6x16x4xf32>
    %29 = vector.shape_cast %28 : vector<6x16x4xf32> to vector<96x4xf32>
    %30 = arith.truncf %29 : vector<96x4xf32> to vector<96x4xbf16>
    %c0_27 = arith.constant 0 : index
    %c16 = arith.constant 16 : index
    %31 = vector.load %arg9[%c0_27, %c16] : memref<96x36xbf16, #tpu.memory_space<vmem>>, vector<96x4xbf16>
    tpu.vector_store %arg9[%c0_27, %c16], %30 {strides = array<i32>} : memref<96x36xbf16, #tpu.memory_space<vmem>>, vector<96x4xbf16>,
    %c1_28 = arith.constant 1 : index
    %c2_29 = arith.constant 2 : index
    %c0_30 = arith.constant 0 : index
    %32 = vector.load %arg8[%c1_28, %c2_29, %c0_30] : memref<8x18x4xf32, #tpu.memory_space<vmem>>, vector<6x16x4xf32>
    %33 = vector.shape_cast %32 : vector<6x16x4xf32> to vector<96x4xf32>
    %34 = arith.truncf %33 : vector<96x4xf32> to vector<96x4xbf16>
    %c0_31 = arith.constant 0 : index
    %c20 = arith.constant 20 : index
    %35 = vector.load %arg9[%c0_31, %c20] : memref<96x36xbf16, #tpu.memory_space<vmem>>, vector<96x4xbf16>
    tpu.vector_store %arg9[%c0_31, %c20], %34 {strides = array<i32>} : memref<96x36xbf16, #tpu.memory_space<vmem>>, vector<96x4xbf16>,
    %c2_32 = arith.constant 2 : index
    %c0_33 = arith.constant 0 : index
    %c0_34 = arith.constant 0 : index
    %36 = vector.load %arg8[%c2_32, %c0_33, %c0_34] : memref<8x18x4xf32, #tpu.memory_space<vmem>>, vector<6x16x4xf32>
    %37 = vector.shape_cast %36 : vector<6x16x4xf32> to vector<96x4xf32>
    %38 = arith.truncf %37 : vector<96x4xf32> to vector<96x4xbf16>
    %c0_35 = arith.constant 0 : index
    %c24 = arith.constant 24 : index
    %39 = vector.load %arg9[%c0_35, %c24] : memref<96x36xbf16, #tpu.memory_space<vmem>>, vector<96x4xbf16>
    tpu.vector_store %arg9[%c0_35, %c24], %38 {strides = array<i32>} : memref<96x36xbf16, #tpu.memory_space<vmem>>, vector<96x4xbf16>,
    %c2_36 = arith.constant 2 : index
    %c1_37 = arith.constant 1 : index
    %c0_38 = arith.constant 0 : index
    %40 = vector.load %arg8[%c2_36, %c1_37, %c0_38] : memref<8x18x4xf32, #tpu.memory_space<vmem>>, vector<6x16x4xf32>
    %41 = vector.shape_cast %40 : vector<6x16x4xf32> to vector<96x4xf32>
    %42 = arith.truncf %41 : vector<96x4xf32> to vector<96x4xbf16>
    %c0_39 = arith.constant 0 : index
    %c28 = arith.constant 28 : index
    %43 = vector.load %arg9[%c0_39, %c28] : memref<96x36xbf16, #tpu.memory_space<vmem>>, vector<96x4xbf16>
    tpu.vector_store %arg9[%c0_39, %c28], %42 {strides = array<i32>} : memref<96x36xbf16, #tpu.memory_space<vmem>>, vector<96x4xbf16>,
    %c2_40 = arith.constant 2 : index
    %c2_41 = arith.constant 2 : index
    %c0_42 = arith.constant 0 : index
    %44 = vector.load %arg8[%c2_40, %c2_41, %c0_42] : memref<8x18x4xf32, #tpu.memory_space<vmem>>, vector<6x16x4xf32>
    %45 = vector.shape_cast %44 : vector<6x16x4xf32> to vector<96x4xf32>
    %46 = arith.truncf %45 : vector<96x4xf32> to vector<96x4xbf16>
    %c0_43 = arith.constant 0 : index
    %c32 = arith.constant 32 : index
    %47 = vector.load %arg9[%c0_43, %c32] : memref<96x36xbf16, #tpu.memory_space<vmem>>, vector<96x4xbf16>
    tpu.vector_store %arg9[%c0_43, %c32], %46 {strides = array<i32>} : memref<96x36xbf16, #tpu.memory_space<vmem>>, vector<96x4xbf16>,
    %c0_44 = arith.constant 0 : index
    %c0_45 = arith.constant 0 : index
    %48 = vector.load %arg9[%c0_44, %c0_45] : memref<96x36xbf16, #tpu.memory_space<vmem>>, vector<96x36xbf16>
    %c0_46 = arith.constant 0 : index
    %c0_47 = arith.constant 0 : index
    %49 = vector.load %arg3[%c0_46, %c0_47] : memref<36x8xbf16, #tpu.memory_space<vmem>>, vector<36x8xbf16>
    %cst_48 = arith.constant dense<0.000000e+00> : vector<96x8xf32>
    %50 = tpu.matmul %48, %49, %cst_48 {dimension_numbers = #tpu.dot_dimension_numbers<[1], [0], [0], [1], [0, 0, 1, 1], [], []>} : vector<96x36xbf16>, vector<36x8xbf16>, vector<96x8xf32> -> vector<96x8xf32>
    %c0_49 = arith.constant 0 : index
    %c0_50 = arith.constant 0 : index
    %51 = vector.load %arg4[%c0_49, %c0_50] : memref<1x8xf32, #tpu.memory_space<vmem>>, vector<1x8xf32>
    %52 = vector.broadcast %51 : vector<1x8xf32> to vector<96x8xf32>
    %53 = arith.addf %50, %52 : vector<96x8xf32>
    %cst_51 = arith.constant 0.000000e+00 : f32
    %54 = vector.broadcast %cst_51 : f32 to vector<96x8xf32>
    %55 = arith.maximumf %53, %54 : vector<96x8xf32>
    %cst_52 = arith.constant 0.000000e+00 : f32
    %56 = vector.broadcast %cst_52 : f32 to vector<6x1x8xf32>
    %c0_53 = arith.constant 0 : index
    %c0_54 = arith.constant 0 : index
    %c0_55 = arith.constant 0 : index
    %57 = vector.load %arg10[%c0_53, %c0_54, %c0_55] : memref<6x18x8xf32, #tpu.memory_space<vmem>>, vector<6x1x8xf32>
    tpu.vector_store %arg10[%c0_53, %c0_54, %c0_55], %56 {strides = array<i32>} : memref<6x18x8xf32, #tpu.memory_space<vmem>>, vector<6x1x8xf32>,
    %c0_56 = arith.constant 0 : index
    %c17_57 = arith.constant 17 : index
    %c0_58 = arith.constant 0 : index
    %58 = vector.load %arg10[%c0_56, %c17_57, %c0_58] : memref<6x18x8xf32, #tpu.memory_space<vmem>>, vector<6x1x8xf32>
    tpu.vector_store %arg10[%c0_56, %c17_57, %c0_58], %56 {strides = array<i32>} : memref<6x18x8xf32, #tpu.memory_space<vmem>>, vector<6x1x8xf32>,
    %59 = vector.shape_cast %55 : vector<96x8xf32> to vector<6x16x8xf32>
    %c0_59 = arith.constant 0 : index
    %c1_60 = arith.constant 1 : index
    %c0_61 = arith.constant 0 : index
    %60 = vector.load %arg10[%c0_59, %c1_60, %c0_61] : memref<6x18x8xf32, #tpu.memory_space<vmem>>, vector<6x16x8xf32>
    tpu.vector_store %arg10[%c0_59, %c1_60, %c0_61], %59 {strides = array<i32>} : memref<6x18x8xf32, #tpu.memory_space<vmem>>, vector<6x16x8xf32>,
    %cst_62 = arith.constant 0.000000e+00 : f32
    %61 = vector.broadcast %cst_62 : f32 to vector<18x8xf32>
    %c0_i32_63 = arith.constant 0 : i32
    %62 = arith.cmpi eq, %arg1, %c0_i32_63 : i32
    %63 = arith.extui %62 : i1 to i32
    %c0_i32_64 = arith.constant 0 : i32
    %64 = arith.cmpi ne, %63, %c0_i32_64 : i32
    scf.if %64 {
      %c0_119 = arith.constant 0 : index
      %c0_120 = arith.constant 0 : index
      %c0_121 = arith.constant 0 : index
      %115 = vector.load %arg10[%c0_119, %c0_120, %c0_121] : memref<6x18x8xf32, #tpu.memory_space<vmem>>, vector<1x18x8xf32>
      %116 = vector.shape_cast %115 : vector<1x18x8xf32> to vector<18x8xf32>
      %117 = vector.shape_cast %61 : vector<18x8xf32> to vector<1x18x8xf32>
      tpu.vector_store %arg10[%c0_119, %c0_120, %c0_121], %117 {strides = array<i32>} : memref<6x18x8xf32, #tpu.memory_space<vmem>>, vector<1x18x8xf32>,
    } else {
    }
    %c3_i32_65 = arith.constant 3 : i32
    %65 = arith.cmpi eq, %arg1, %c3_i32_65 : i32
    %66 = arith.extui %65 : i1 to i32
    %c0_i32_66 = arith.constant 0 : i32
    %67 = arith.cmpi ne, %66, %c0_i32_66 : i32
    scf.if %67 {
      %c5 = arith.constant 5 : index
      %c0_119 = arith.constant 0 : index
      %c0_120 = arith.constant 0 : index
      %115 = vector.load %arg10[%c5, %c0_119, %c0_120] : memref<6x18x8xf32, #tpu.memory_space<vmem>>, vector<1x18x8xf32>
      %116 = vector.shape_cast %115 : vector<1x18x8xf32> to vector<18x8xf32>
      %117 = vector.shape_cast %61 : vector<18x8xf32> to vector<1x18x8xf32>
      tpu.vector_store %arg10[%c5, %c0_119, %c0_120], %117 {strides = array<i32>} : memref<6x18x8xf32, #tpu.memory_space<vmem>>, vector<1x18x8xf32>,
    } else {
    }
    %c0_67 = arith.constant 0 : index
    %c0_68 = arith.constant 0 : index
    %c0_69 = arith.constant 0 : index
    %68 = vector.load %arg10[%c0_67, %c0_68, %c0_69] : memref<6x18x8xf32, #tpu.memory_space<vmem>>, vector<4x16x8xf32>
    %69 = vector.shape_cast %68 : vector<4x16x8xf32> to vector<64x8xf32>
    %70 = arith.truncf %69 : vector<64x8xf32> to vector<64x8xbf16>
    %c0_70 = arith.constant 0 : index
    %c0_71 = arith.constant 0 : index
    %71 = vector.load %arg11[%c0_70, %c0_71] : memref<64x72xbf16, #tpu.memory_space<vmem>>, vector<64x8xbf16>
    tpu.vector_store %arg11[%c0_70, %c0_71], %70 {strides = array<i32>} : memref<64x72xbf16, #tpu.memory_space<vmem>>, vector<64x8xbf16>,
    %c0_72 = arith.constant 0 : index
    %c1_73 = arith.constant 1 : index
    %c0_74 = arith.constant 0 : index
    %72 = vector.load %arg10[%c0_72, %c1_73, %c0_74] : memref<6x18x8xf32, #tpu.memory_space<vmem>>, vector<4x16x8xf32>
    %73 = vector.shape_cast %72 : vector<4x16x8xf32> to vector<64x8xf32>
    %74 = arith.truncf %73 : vector<64x8xf32> to vector<64x8xbf16>
    %c0_75 = arith.constant 0 : index
    %c8_76 = arith.constant 8 : index
    %75 = vector.load %arg11[%c0_75, %c8_76] : memref<64x72xbf16, #tpu.memory_space<vmem>>, vector<64x8xbf16>
    tpu.vector_store %arg11[%c0_75, %c8_76], %74 {strides = array<i32>} : memref<64x72xbf16, #tpu.memory_space<vmem>>, vector<64x8xbf16>,
    %c0_77 = arith.constant 0 : index
    %c2_78 = arith.constant 2 : index
    %c0_79 = arith.constant 0 : index
    %76 = vector.load %arg10[%c0_77, %c2_78, %c0_79] : memref<6x18x8xf32, #tpu.memory_space<vmem>>, vector<4x16x8xf32>
    %77 = vector.shape_cast %76 : vector<4x16x8xf32> to vector<64x8xf32>
    %78 = arith.truncf %77 : vector<64x8xf32> to vector<64x8xbf16>
    %c0_80 = arith.constant 0 : index
    %c16_81 = arith.constant 16 : index
    %79 = vector.load %arg11[%c0_80, %c16_81] : memref<64x72xbf16, #tpu.memory_space<vmem>>, vector<64x8xbf16>
    tpu.vector_store %arg11[%c0_80, %c16_81], %78 {strides = array<i32>} : memref<64x72xbf16, #tpu.memory_space<vmem>>, vector<64x8xbf16>,
    %c1_82 = arith.constant 1 : index
    %c0_83 = arith.constant 0 : index
    %c0_84 = arith.constant 0 : index
    %80 = vector.load %arg10[%c1_82, %c0_83, %c0_84] : memref<6x18x8xf32, #tpu.memory_space<vmem>>, vector<4x16x8xf32>
    %81 = vector.shape_cast %80 : vector<4x16x8xf32> to vector<64x8xf32>
    %82 = arith.truncf %81 : vector<64x8xf32> to vector<64x8xbf16>
    %c0_85 = arith.constant 0 : index
    %c24_86 = arith.constant 24 : index
    %83 = vector.load %arg11[%c0_85, %c24_86] : memref<64x72xbf16, #tpu.memory_space<vmem>>, vector<64x8xbf16>
    tpu.vector_store %arg11[%c0_85, %c24_86], %82 {strides = array<i32>} : memref<64x72xbf16, #tpu.memory_space<vmem>>, vector<64x8xbf16>,
    %c1_87 = arith.constant 1 : index
    %c1_88 = arith.constant 1 : index
    %c0_89 = arith.constant 0 : index
    %84 = vector.load %arg10[%c1_87, %c1_88, %c0_89] : memref<6x18x8xf32, #tpu.memory_space<vmem>>, vector<4x16x8xf32>
    %85 = vector.shape_cast %84 : vector<4x16x8xf32> to vector<64x8xf32>
    %86 = arith.truncf %85 : vector<64x8xf32> to vector<64x8xbf16>
    %c0_90 = arith.constant 0 : index
    %c32_91 = arith.constant 32 : index
    %87 = vector.load %arg11[%c0_90, %c32_91] : memref<64x72xbf16, #tpu.memory_space<vmem>>, vector<64x8xbf16>
    tpu.vector_store %arg11[%c0_90, %c32_91], %86 {strides = array<i32>} : memref<64x72xbf16, #tpu.memory_space<vmem>>, vector<64x8xbf16>,
    %c1_92 = arith.constant 1 : index
    %c2_93 = arith.constant 2 : index
    %c0_94 = arith.constant 0 : index
    %88 = vector.load %arg10[%c1_92, %c2_93, %c0_94] : memref<6x18x8xf32, #tpu.memory_space<vmem>>, vector<4x16x8xf32>
    %89 = vector.shape_cast %88 : vector<4x16x8xf32> to vector<64x8xf32>
    %90 = arith.truncf %89 : vector<64x8xf32> to vector<64x8xbf16>
    %c0_95 = arith.constant 0 : index
    %c40 = arith.constant 40 : index
    %91 = vector.load %arg11[%c0_95, %c40] : memref<64x72xbf16, #tpu.memory_space<vmem>>, vector<64x8xbf16>
    tpu.vector_store %arg11[%c0_95, %c40], %90 {strides = array<i32>} : memref<64x72xbf16, #tpu.memory_space<vmem>>, vector<64x8xbf16>,
    %c2_96 = arith.constant 2 : index
    %c0_97 = arith.constant 0 : index
    %c0_98 = arith.constant 0 : index
    %92 = vector.load %arg10[%c2_96, %c0_97, %c0_98] : memref<6x18x8xf32, #tpu.memory_space<vmem>>, vector<4x16x8xf32>
    %93 = vector.shape_cast %92 : vector<4x16x8xf32> to vector<64x8xf32>
    %94 = arith.truncf %93 : vector<64x8xf32> to vector<64x8xbf16>
    %c0_99 = arith.constant 0 : index
    %c48 = arith.constant 48 : index
    %95 = vector.load %arg11[%c0_99, %c48] : memref<64x72xbf16, #tpu.memory_space<vmem>>, vector<64x8xbf16>
    tpu.vector_store %arg11[%c0_99, %c48], %94 {strides = array<i32>} : memref<64x72xbf16, #tpu.memory_space<vmem>>, vector<64x8xbf16>,
    %c2_100 = arith.constant 2 : index
    %c1_101 = arith.constant 1 : index
    %c0_102 = arith.constant 0 : index
    %96 = vector.load %arg10[%c2_100, %c1_101, %c0_102] : memref<6x18x8xf32, #tpu.memory_space<vmem>>, vector<4x16x8xf32>
    %97 = vector.shape_cast %96 : vector<4x16x8xf32> to vector<64x8xf32>
    %98 = arith.truncf %97 : vector<64x8xf32> to vector<64x8xbf16>
    %c0_103 = arith.constant 0 : index
    %c56 = arith.constant 56 : index
    %99 = vector.load %arg11[%c0_103, %c56] : memref<64x72xbf16, #tpu.memory_space<vmem>>, vector<64x8xbf16>
    tpu.vector_store %arg11[%c0_103, %c56], %98 {strides = array<i32>} : memref<64x72xbf16, #tpu.memory_space<vmem>>, vector<64x8xbf16>,
    %c2_104 = arith.constant 2 : index
    %c2_105 = arith.constant 2 : index
    %c0_106 = arith.constant 0 : index
    %100 = vector.load %arg10[%c2_104, %c2_105, %c0_106] : memref<6x18x8xf32, #tpu.memory_space<vmem>>, vector<4x16x8xf32>
    %101 = vector.shape_cast %100 : vector<4x16x8xf32> to vector<64x8xf32>
    %102 = arith.truncf %101 : vector<64x8xf32> to vector<64x8xbf16>
    %c0_107 = arith.constant 0 : index
    %c64 = arith.constant 64 : index
    %103 = vector.load %arg11[%c0_107, %c64] : memref<64x72xbf16, #tpu.memory_space<vmem>>, vector<64x8xbf16>
    tpu.vector_store %arg11[%c0_107, %c64], %102 {strides = array<i32>} : memref<64x72xbf16, #tpu.memory_space<vmem>>, vector<64x8xbf16>,
    %c0_108 = arith.constant 0 : index
    %c0_109 = arith.constant 0 : index
    %104 = vector.load %arg11[%c0_108, %c0_109] : memref<64x72xbf16, #tpu.memory_space<vmem>>, vector<64x72xbf16>
    %c0_110 = arith.constant 0 : index
    %c0_111 = arith.constant 0 : index
    %105 = vector.load %arg5[%c0_110, %c0_111] : memref<72x8xbf16, #tpu.memory_space<vmem>>, vector<72x8xbf16>
    %cst_112 = arith.constant dense<0.000000e+00> : vector<64x8xf32>
    %106 = tpu.matmul %104, %105, %cst_112 {dimension_numbers = #tpu.dot_dimension_numbers<[1], [0], [0], [1], [0, 0, 1, 1], [], []>} : vector<64x72xbf16>, vector<72x8xbf16>, vector<64x8xf32> -> vector<64x8xf32>
    %c0_113 = arith.constant 0 : index
    %c0_114 = arith.constant 0 : index
    %107 = vector.load %arg6[%c0_113, %c0_114] : memref<1x8xf32, #tpu.memory_space<vmem>>, vector<1x8xf32>
    %108 = vector.broadcast %107 : vector<1x8xf32> to vector<64x8xf32>
    %109 = arith.addf %106, %108 : vector<64x8xf32>
    %cst_115 = arith.constant 0.000000e+00 : f32
    %110 = vector.broadcast %cst_115 : f32 to vector<64x8xf32>
    %111 = arith.maximumf %109, %110 : vector<64x8xf32>
    %c0_116 = arith.constant 0 : index
    %c0_117 = arith.constant 0 : index
    %c0_118 = arith.constant 0 : index
    %112 = vector.load %arg7[%c0_116, %c0_117, %c0_118] : memref<1x64x8xf32, #tpu.memory_space<vmem>>, vector<1x64x8xf32>
    %113 = vector.shape_cast %112 : vector<1x64x8xf32> to vector<64x8xf32>
    %114 = vector.shape_cast %111 : vector<64x8xf32> to vector<1x64x8xf32>
    tpu.vector_store %arg7[%c0_116, %c0_117, %c0_118], %114 {strides = array<i32>} : memref<1x64x8xf32, #tpu.memory_space<vmem>>, vector<1x64x8xf32>,
    return
  }
  func.func @transform_0(%arg0: i32, %arg1: i32) -> (i32, i32, i32, i32) {
    %c0_i32 = arith.constant 0 : i32
    %c0_i32_0 = arith.constant 0 : i32
    %c0_i32_1 = arith.constant 0 : i32
    %c0_i32_2 = arith.constant 0 : i32
    return %arg0, %c0_i32, %c0_i32_0, %c0_i32_1 : i32, i32, i32, i32
  }
  func.func @transform_1(%arg0: i32, %arg1: i32) -> (i32, i32) {
    %c0_i32 = arith.constant 0 : i32
    %c0_i32_0 = arith.constant 0 : i32
    %c0_i32_1 = arith.constant 0 : i32
    return %c0_i32, %c0_i32_0 : i32, i32
  }
  func.func @transform_2(%arg0: i32, %arg1: i32) -> (i32, i32) {
    %c0_i32 = arith.constant 0 : i32
    %c0_i32_0 = arith.constant 0 : i32
    %c0_i32_1 = arith.constant 0 : i32
    return %c0_i32, %c0_i32_0 : i32, i32
  }
  func.func @transform_3(%arg0: i32, %arg1: i32) -> (i32, i32) {
    %c0_i32 = arith.constant 0 : i32
    %c0_i32_0 = arith.constant 0 : i32
    %c0_i32_1 = arith.constant 0 : i32
    return %c0_i32, %c0_i32_0 : i32, i32
  }
  func.func @transform_4(%arg0: i32, %arg1: i32) -> (i32, i32) {
    %c0_i32 = arith.constant 0 : i32
    %c0_i32_0 = arith.constant 0 : i32
    %c0_i32_1 = arith.constant 0 : i32
    return %c0_i32, %c0_i32_0 : i32, i32
  }
  func.func @transform_5(%arg0: i32, %arg1: i32) -> (i32, i32, i32) {
    %c0_i32 = arith.constant 0 : i32
    %c0_i32_0 = arith.constant 0 : i32
    return %arg0, %arg1, %c0_i32 : i32, i32, i32
  }
}

</mosaic_0001>

<llo_original>
// kernel: tpu_custom_call.1
$region0: #{tpu_custom_call.1}
  #allocation0 [shape = 'u32[]', space=smem, size = 0x4, offset = 0x4, fixed_abs, tag = 'smem constant byte address 0x4 - core index']
  #allocation1 [shape = 'u32[144,128]{1,0:T(1,128)}', space=vmem, size = 0x12000, scoped, tag = 'internal scratch']
  #allocation2 [shape = 'f32[8,18,4]{2,1,0:T(8,128)}', space=vmem, size = 0x18000, scoped, tag = 'scratch operand']
  #allocation3 [shape = 'bf16[96,36]{1,0:T(8,128)(2,1)}', space=vmem, size = 0x6000, scoped, tag = 'scratch operand']
  #allocation4 [shape = 'f32[6,18,8]{2,1,0:T(8,128)}', space=vmem, size = 0x12000, scoped, tag = 'scratch operand']
  #allocation5 [shape = 'bf16[64,72]{1,0:T(8,128)(2,1)}', space=vmem, size = 0x4000, scoped, tag = 'scratch operand']
  %s0 = inlined_call_operand.vmem [shape: bf16[2,16,16,4], index: 0, kind: input, shape index: {}]
  %s1 = inlined_call_operand.vmem [shape: bf16[36,8], index: 1, kind: input, shape index: {}]
  %s2 = inlined_call_operand.vmem [shape: f32[1,8], index: 2, kind: input, shape index: {}]
  %s3 = inlined_call_operand.vmem [shape: bf16[72,8], index: 3, kind: input, shape index: {}]
  %s4 = inlined_call_operand.vmem [shape: f32[1,8], index: 4, kind: input, shape index: {}]
  %s5 = inlined_call_operand.vmem [shape: f32[2,256,8], index: 5, kind: output, shape index: {}]
  %s6 = sld [smem:[#allocation0]]
  $region76: #{tpu_custom_call.1} parent=0
    _
  %s8 = ssub.s32 1, %s6
  %s9 = scalar_select 0, %s8, %s6
  loop: start=0, step=1, limit=10
  $region2: #{tpu_custom_call.1} parent=0 // loop_pre_header
    _
  $region3: #{tpu_custom_call.1} parent=0 // loop_header
    %s11 = sphi 0, %s15
    %p12 = scmp.ge.s32.totalorder %s11, 10
    %s18 = sphi 0, %s30
    %s19 = sphi 0, %s26
    %s20 = sphi 0, %s18
    %s21 = sphi 0, %s19
    %s22 = sphi 0, %s20
    %s23 = sphi 0, %s21
    %s33 = sphi 0, %s35
    %s36 = sphi 0, %s33
    %s37 = sphi 0, %s36
    %s53 = sphi 0, %s37
    %s57 = sphi 0, %s57
    %s59 = sphi 0, %s57
    %s60 = sphi 0, %s59
    %s74 = sphi 0, %s60
    %s78 = sphi 0, %s78
    %s80 = sphi 0, %s78
    %s81 = sphi 0, %s80
    %s95 = sphi 0, %s81
    %s99 = sphi 0, %s99
    %s101 = sphi 0, %s99
    %s102 = sphi 0, %s101
    %s116 = sphi 0, %s102
    %s120 = sphi 0, %s120
    %s122 = sphi 0, %s120
    %s123 = sphi 0, %s122
    %s137 = sphi 0, %s123
    %s145 = sphi 0, %s147
    %s148 = sphi 0, %s145
    %s149 = sphi 0, %s148
    %s165 = sphi 0, %s149
  $region4: #{tpu_custom_call.1} parent=0 // loop_header_branch
    %14 = sbr.rel (%p12) target = $region8
  $region5: #{tpu_custom_call.1} parent=0 // loop_body
    %s16 = ssub.s32 %s11, 1
    %s17 = ssub.s32 %s11, 2
    %s24 = sadd.s32 1, %s19
    %p25 = scmp.ge.s32.totalorder %s24, 4
    %s26 = scalar_select %p25, 0, %s24
    %s27 = sadd.s32 1, %s18
    %s28 = scalar_select %p25, %s27, %s18
    %p29 = scmp.ge.s32.totalorder %s28, 2
    %s30 = scalar_select %p29, 0, %s28
    %s31 = ssub.s32 %s18, %s30
    %p32 = scmp.eq.s32.totalorder %s31, 0
    %s34 = sadd.s32 %s33, 1
    %s35 = scalar_select %p32, %s33, %s34
    %p38 = pneg %p32
    %p39 = scmp.eq.s32.totalorder %s11, 7
    %p40 = por %p38, %p39
    %p41 = scmp.ne.s32.totalorder %s33, %s36
    %p42 = scmp.eq.s32.totalorder %s11, 0
    %p43 = por %p41, %p42
    %p44 = scmp.ne.s32.totalorder %s33, %s36
    %p45 = scmp.eq.s32.totalorder %s16, 7
    %p46 = por %p44, %p45
    %p47 = scmp.ne.s32.totalorder %s36, %s37
    %p48 = scmp.eq.s32.totalorder %s16, 0
    %p49 = por %p47, %p48
    %p50 = scmp.ne.s32.totalorder %s36, %s37
    %p51 = scmp.eq.s32.totalorder %s17, 7
    %p52 = por %p50, %p51
    %p54 = scmp.ne.s32.totalorder %s37, %s53
    %p55 = scmp.eq.s32.totalorder %s17, 0
    %p56 = por %p54, %p55
    %s58 = sadd.s32 %s57, 1
    %p61 = scmp.eq.s32.totalorder %s11, 7
    %p62 = scmp.ne.s32.totalorder %s57, %s59
    %p63 = scmp.eq.s32.totalorder %s11, 0
    %p64 = por %p62, %p63
    %p65 = scmp.ne.s32.totalorder %s57, %s59
    %p66 = scmp.eq.s32.totalorder %s16, 7
    %p67 = por %p65, %p66
    %p68 = scmp.ne.s32.totalorder %s59, %s60
    %p69 = scmp.eq.s32.totalorder %s16, 0
    %p70 = por %p68, %p69
    %p71 = scmp.ne.s32.totalorder %s59, %s60
    %p72 = scmp.eq.s32.totalorder %s17, 7
    %p73 = por %p71, %p72
    %p75 = scmp.ne.s32.totalorder %s60, %s74
    %p76 = scmp.eq.s32.totalorder %s17, 0
    %p77 = por %p75, %p76
    %s79 = sadd.s32 %s78, 1
    %p82 = scmp.eq.s32.totalorder %s11, 7
    %p83 = scmp.ne.s32.totalorder %s78, %s80
    %p84 = scmp.eq.s32.totalorder %s11, 0
    %p85 = por %p83, %p84
    %p86 = scmp.ne.s32.totalorder %s78, %s80
    %p87 = scmp.eq.s32.totalorder %s16, 7
    %p88 = por %p86, %p87
    %p89 = scmp.ne.s32.totalorder %s80, %s81
    %p90 = scmp.eq.s32.totalorder %s16, 0
    %p91 = por %p89, %p90
    %p92 = scmp.ne.s32.totalorder %s80, %s81
    %p93 = scmp.eq.s32.totalorder %s17, 7
    %p94 = por %p92, %p93
    %p96 = scmp.ne.s32.totalorder %s81, %s95
    %p97 = scmp.eq.s32.totalorder %s17, 0
    %p98 = por %p96, %p97
    %s100 = sadd.s32 %s99, 1
    %p103 = scmp.eq.s32.totalorder %s11, 7
    %p104 = scmp.ne.s32.totalorder %s99, %s101
    %p105 = scmp.eq.s32.totalorder %s11, 0
    %p106 = por %p104, %p105
    %p107 = scmp.ne.s32.totalorder %s99, %s101
    %p108 = scmp.eq.s32.totalorder %s16, 7
    %p109 = por %p107, %p108
    %p110 = scmp.ne.s32.totalorder %s101, %s102
    %p111 = scmp.eq.s32.totalorder %s16, 0
    %p112 = por %p110, %p111
    %p113 = scmp.ne.s32.totalorder %s101, %s102
    %p114 = scmp.eq.s32.totalorder %s17, 7
    %p115 = por %p113, %p114
    %p117 = scmp.ne.s32.totalorder %s102, %s116
    %p118 = scmp.eq.s32.totalorder %s17, 0
    %p119 = por %p117, %p118
    %s121 = sadd.s32 %s120, 1
    %p124 = scmp.eq.s32.totalorder %s11, 7
    %p125 = scmp.ne.s32.totalorder %s120, %s122
    %p126 = scmp.eq.s32.totalorder %s11, 0
    %p127 = por %p125, %p126
    %p128 = scmp.ne.s32.totalorder %s120, %s122
    %p129 = scmp.eq.s32.totalorder %s16, 7
    %p130 = por %p128, %p129
    %p131 = scmp.ne.s32.totalorder %s122, %s123
    %p132 = scmp.eq.s32.totalorder %s16, 0
    %p133 = por %p131, %p132
    %p134 = scmp.ne.s32.totalorder %s122, %s123
    %p135 = scmp.eq.s32.totalorder %s17, 7
    %p136 = por %p134, %p135
    %p138 = scmp.ne.s32.totalorder %s123, %s137
    %p139 = scmp.eq.s32.totalorder %s17, 0
    %p140 = por %p138, %p139
    %s141 = ssub.s32 %s18, %s30
    %s142 = ssub.s32 %s19, %s26
    %s143 = sor.u32 %s141, %s142
    %p144 = scmp.eq.s32.totalorder %s143, 0
    %s146 = sadd.s32 %s145, 1
    %s147 = scalar_select %p144, %s145, %s146
    %p150 = pneg %p144
    %p151 = scmp.eq.s32.totalorder %s11, 7
    %p152 = por %p150, %p151
    %p153 = scmp.ne.s32.totalorder %s145, %s148
    %p154 = scmp.eq.s32.totalorder %s11, 0
    %p155 = por %p153, %p154
    %p156 = scmp.ne.s32.totalorder %s145, %s148
    %p157 = scmp.eq.s32.totalorder %s16, 7
    %p158 = por %p156, %p157
    %p159 = scmp.ne.s32.totalorder %s148, %s149
    %p160 = scmp.eq.s32.totalorder %s16, 0
    %p161 = por %p159, %p160
    %p162 = scmp.ne.s32.totalorder %s148, %s149
    %p163 = scmp.eq.s32.totalorder %s17, 7
    %p164 = por %p162, %p163
    %p166 = scmp.ne.s32.totalorder %s149, %s165
    %p167 = scmp.eq.s32.totalorder %s17, 0
    %p168 = por %p166, %p167
    %p169 = scmp.le.s32.totalorder 1, %s11
    %p170 = scmp.lt.s32.totalorder %s11, 9
    %p171 = pnand %p169, %p170
    %p172 = pneg %p171
    // Predicated region
    $region9: #{tpu_custom_call.1} parent=5 // pred_check
      _
    $region10: #{tpu_custom_call.1} parent=5 // pred_check_branch
      %174 = sbr.rel (%p171) target = $region12
    $region11: #{tpu_custom_call.1} parent=5 // pred_region
      %s175 = ssub.s32 %s11, 1
      // Predicated region
      $region13: #{tpu_custom_call.1} parent=11 // pred_check
        %p176 = pneg %p70
      $region14: #{tpu_custom_call.1} parent=11 // pred_check_branch
        %178 = sbr.rel (%p176) target = $region16
      $region15: #{tpu_custom_call.1} parent=11 // pred_region
        _
      $region16: #{tpu_custom_call.1} parent=11 // pred_fallthru
        _
      // Predicated region
      $region17: #{tpu_custom_call.1} parent=11 // pred_check
        %p179 = pneg %p91
      $region18: #{tpu_custom_call.1} parent=11 // pred_check_branch
        %181 = sbr.rel (%p179) target = $region20
      $region19: #{tpu_custom_call.1} parent=11 // pred_region
        _
      $region20: #{tpu_custom_call.1} parent=11 // pred_fallthru
        _
      // Predicated region
      $region21: #{tpu_custom_call.1} parent=11 // pred_check
        %p182 = pneg %p112
      $region22: #{tpu_custom_call.1} parent=11 // pred_check_branch
        %184 = sbr.rel (%p182) target = $region24
      $region23: #{tpu_custom_call.1} parent=11 // pred_region
        _
      $region24: #{tpu_custom_call.1} parent=11 // pred_fallthru
        _
      // Predicated region
      $region25: #{tpu_custom_call.1} parent=11 // pred_check
        %p185 = pneg %p133
      $region26: #{tpu_custom_call.1} parent=11 // pred_check_branch
        %187 = sbr.rel (%p185) target = $region28
      $region27: #{tpu_custom_call.1} parent=11 // pred_region
        _
      $region28: #{tpu_custom_call.1} parent=11 // pred_fallthru
        _
    $region12: #{tpu_custom_call.1} parent=5 // pred_fallthru
      _
    %p188 = scmp.lt.s32.totalorder %s11, 8
    // Predicated region
    $region29: #{tpu_custom_call.1} parent=5 // pred_check
      %p189 = pneg %p188
    $region30: #{tpu_custom_call.1} parent=5 // pred_check_branch
      %191 = sbr.rel (%p189) target = $region32
    $region31: #{tpu_custom_call.1} parent=5 // pred_region
      // Predicated region
      $region33: #{tpu_custom_call.1} parent=31 // pred_check
        %p192 = pneg %p43
      $region34: #{tpu_custom_call.1} parent=31 // pred_check_branch
        %194 = sbr.rel (%p192) target = $region36
      $region35: #{tpu_custom_call.1} parent=31 // pred_region
        %p195 = scmp.lt.s32.totalorder %s18, 1
        %s196 = scalar_select %p195, %s18, 1
        %s197 = smul.addr %s196, 32
        %s198 = smul.addr %s197, 4
        %s199 = scalar_lea.vmem %s0, %s198
      $region36: #{tpu_custom_call.1} parent=31 // pred_fallthru
        _
    $region32: #{tpu_custom_call.1} parent=5 // pred_fallthru
      _
    %p200 = scmp.le.s32.totalorder 1, %s11
    %p201 = scmp.lt.s32.totalorder %s11, 9
    %p202 = pnand %p200, %p201
    %p203 = pneg %p202
    // Predicated region
    $region37: #{tpu_custom_call.1} parent=5 // pred_check
      _
    $region38: #{tpu_custom_call.1} parent=5 // pred_check_branch
      %205 = sbr.rel (%p202) target = $region40
    $region39: #{tpu_custom_call.1} parent=5 // pred_region
      %s206 = ssub.s32 %s11, 1
      %p207 = scmp.lt.s32.totalorder %s20, 1
      %s208 = scalar_select %p207, %s20, 1
      %s209 = smul.addr %s208, 32
      %s210 = smul.addr %s209, 4
      %s211 = scalar_lea.vmem %s0, %s210
      %p212 = pneg %p49
      %p213 = pneg %p46
      %p214 = pneg %p70
      %p215 = pneg %p67
      %p216 = pneg %p91
      %p217 = pneg %p88
      %p218 = pneg %p112
      %p219 = pneg %p109
      %p220 = pneg %p133
      %p221 = pneg %p130
      %p222 = pneg %p161
      %p223 = pneg %p158
      %s224 = smul.u32 8, %s21
      %p225 = scmp.lt.s32.totalorder %s20, 1
      %s226 = scalar_select %p225, %s20, 1
      %p227 = scmp.lt.s32.totalorder %s224, 31
      %s228 = scalar_select %p227, %s224, 31
      %s229 = smul.addr %s226, 32
      %s230 = sadd.s32 %s228, %s229
      %s231 = smul.addr %s230, 8
      %s232 = scalar_lea.vmem %s5, %s231
      %p233 = scmp.lt.s32.totalorder %s20, 1
      %s234 = scalar_select %p233, %s20, 1
      %s235 = smul.addr %s234, 32
      %s236 = smul.addr %s235, 4
      %s237 = scalar_lea.vmem %s0, %s236
      %s238 = smul.u32 8, %s21
      %p239 = scmp.lt.s32.totalorder %s20, 1
      %s240 = scalar_select %p239, %s20, 1
      %p241 = scmp.lt.s32.totalorder %s238, 31
      %s242 = scalar_select %p241, %s238, 31
      %s243 = smul.addr %s240, 32
      %s244 = sadd.s32 %s242, %s243
      %s245 = smul.addr %s244, 8
      %s246 = scalar_lea.vmem %s5, %s245
      %s247 = smul.u32 8, %s21
      %s249 = smul.u32 %s21, 4
      %vm250 = vcmask 24576
      %251 = vst.msk [vmem:[#allocation2] sm:$0x1] %vm250, 0.0
      %252 = vst.msk [vmem:[#allocation2 + $0x18] sm:$0x1] %vm250, 0.0
      %253 = vst.msk [vmem:[#allocation2 + $0x30] sm:$0x1] %vm250, 0.0
      %254 = vst.msk [vmem:[#allocation2 + $0x48] sm:$0x1] %vm250, 0.0
      %255 = vst.msk [vmem:[#allocation2 + $0x60] sm:$0x1] %vm250, 0.0
      %256 = vst.msk [vmem:[#allocation2 + $0x78] sm:$0x1] %vm250, 0.0
      %257 = vst.msk [vmem:[#allocation2 + $0x90] sm:$0x1] %vm250, 0.0
      %258 = vst.msk [vmem:[#allocation2 + $0xa8] sm:$0x1] %vm250, 0.0
      %259 = vst.msk [vmem:[#allocation2 + $0x11] sm:$0x1] %vm250, 0.0
      %260 = vst.msk [vmem:[#allocation2 + $0x29] sm:$0x1] %vm250, 0.0
      %261 = vst.msk [vmem:[#allocation2 + $0x41] sm:$0x1] %vm250, 0.0
      %262 = vst.msk [vmem:[#allocation2 + $0x59] sm:$0x1] %vm250, 0.0
      %263 = vst.msk [vmem:[#allocation2 + $0x71] sm:$0x1] %vm250, 0.0
      %264 = vst.msk [vmem:[#allocation2 + $0x89] sm:$0x1] %vm250, 0.0
      %265 = vst.msk [vmem:[#allocation2 + $0xa1] sm:$0x1] %vm250, 0.0
      %266 = vst.msk [vmem:[#allocation2 + $0xb9] sm:$0x1] %vm250, 0.0
      loop: start=0, step=1, limit=8
      $region41: #{tpu_custom_call.1} parent=39 // loop_pre_header
        _
      $region42: #{tpu_custom_call.1} parent=39 // loop_header
        %s268 = sphi 0, %s272
        %p269 = scmp.ge.s32.totalorder %s268, 8
      $region43: #{tpu_custom_call.1} parent=39 // loop_header_branch
        %271 = sbr.rel (%p269) target = $region47
      $region44: #{tpu_custom_call.1} parent=39 // loop_body
        %s273 = ssub.s32 %s249, 2
        %s274 = sadd.s32 %s273, %s268
        %p275 = scmp.gt.s32.totalorder %s274, 0
        %s276 = scalar_select %p275, %s274, 0
        %p277 = scmp.lt.s32.totalorder %s276, 15
        %s278 = scalar_select %p277, %s276, 15
        %s279 = smul.u32 %s278, 2
        %s280 = smul.addr %s279, 4
        %s281 = scalar_lea.vmem %s237, %s280
        %v282 = vld [vmem:[%s281] sm:$0xf]
        %v283 = vld [vmem:[%s281 + $0x4] sm:$0xf]
        %v284 = vunpack.c.l.bf16 %v282
        %v285 = vunpack.c.l.bf16 %v283
        %s286 = smul.u32 %s268, 24
        %s287 = scalar_lea.vmem [#allocation2], %s286
        %vm288 = vcmask 31744
        %289 = vst.msk [vmem:[%s287 + $0x1] sm:$0xff] %vm288, %v284
        %290 = vst.msk [vmem:[%s287 + $0x9] sm:$0xff] %vm288, %v285
      $region45: #{tpu_custom_call.1} parent=39 // loop_footer
        %s272 = sadd.s32 1, %s268
      $region46: #{tpu_custom_call.1} parent=39 // loop_footer_branch
        %267 = sbr.rel target = $region42
      $region47: #{tpu_custom_call.1} parent=39 // loop_exit
        _
      %p291 = scmp.eq.s32.totalorder %s21, 0
      // Predicated region
      $region48: #{tpu_custom_call.1} parent=39 // pred_check
        %p292 = pneg %p291
      $region49: #{tpu_custom_call.1} parent=39 // pred_check_branch
        %294 = sbr.rel (%p292) target = $region51
      $region50: #{tpu_custom_call.1} parent=39 // pred_region
        %s295 = scalar_lea.vmem [#allocation2], 24
        %vm296 = vcmask 31744
        %297 = vst.msk [vmem:[%s295 + $0x1] sm:$0xff] %vm296, 0.0
        %298 = vst.msk [vmem:[%s295 + $0x9] sm:$0xff] %vm296, 0.0
      $region51: #{tpu_custom_call.1} parent=39 // pred_fallthru
        _
      %p299 = scmp.eq.s32.totalorder %s21, 3
      // Predicated region
      $region52: #{tpu_custom_call.1} parent=39 // pred_check
        %p300 = pneg %p299
      $region53: #{tpu_custom_call.1} parent=39 // pred_check_branch
        %302 = sbr.rel (%p300) target = $region55
      $region54: #{tpu_custom_call.1} parent=39 // pred_region
        %s303 = scalar_lea.vmem [#allocation2], 144
        %vm304 = vcmask 31744
        %305 = vst.msk [vmem:[%s303 + $0x1] sm:$0xff] %vm304, 0.0
        %306 = vst.msk [vmem:[%s303 + $0x9] sm:$0xff] %vm304, 0.0
      $region55: #{tpu_custom_call.1} parent=39 // pred_fallthru
        _
      %v307 = vld [vmem:[#allocation2] sm:$0xff]
      %v308 = vld [vmem:[#allocation2 + $0x8] sm:$0xff]
      %v309 = vld [vmem:[#allocation2 + $0x18] sm:$0xff]
      %v310 = vld [vmem:[#allocation2 + $0x20] sm:$0xff]
      %v311 = vld [vmem:[#allocation2 + $0x30] sm:$0xff]
      %v312 = vld [vmem:[#allocation2 + $0x38] sm:$0xff]
      %v313 = vld [vmem:[#allocation2 + $0x48] sm:$0xff]
      %v314 = vld [vmem:[#allocation2 + $0x50] sm:$0xff]
      %v315 = vld [vmem:[#allocation2 + $0x60] sm:$0xff]
      %v316 = vld [vmem:[#allocation2 + $0x68] sm:$0xff]
      %v317 = vld [vmem:[#allocation2 + $0x78] sm:$0xff]
      %v318 = vld [vmem:[#allocation2 + $0x80] sm:$0xff]
      %v319 = vpack.c.bf16 %v308, %v307
      %v320 = vpack.c.bf16 %v310, %v309
      %v321 = vpack.c.bf16 %v312, %v311
      %v322 = vpack.c.bf16 %v314, %v313
      %v323 = vpack.c.bf16 %v316, %v315
      %v324 = vpack.c.bf16 %v318, %v317
      %v331 = vunpack.c.l.b16 %v319
      %v332 = vunpack.c.h.b16 %v319
      %v333 = vunpack.c.l.b16 %v320
      %v334 = vunpack.c.h.b16 %v320
      %v335 = vunpack.c.l.b16 %v321
      %v336 = vunpack.c.h.b16 %v321
      %v337 = vunpack.c.l.b16 %v322
      %v338 = vunpack.c.h.b16 %v322
      %v339 = vunpack.c.l.b16 %v323
      %v340 = vunpack.c.h.b16 %v323
      %v341 = vunpack.c.l.b16 %v324
      %v342 = vunpack.c.h.b16 %v324
      %v343 = vpack.c.b16 %v331, %v331
      %v344 = vpack.c.b16 %v332, %v332
      %v345 = vpack.c.b16 %v333, %v333
      %v346 = vpack.c.b16 %v334, %v334
      %v347 = vpack.c.b16 %v335, %v335
      %v348 = vpack.c.b16 %v336, %v336
      %v349 = vpack.c.b16 %v337, %v337
      %v350 = vpack.c.b16 %v338, %v338
      %v351 = vpack.c.b16 %v339, %v339
      %v352 = vpack.c.b16 %v340, %v340
      %v353 = vpack.c.b16 %v341, %v341
      %v354 = vpack.c.b16 %v342, %v342
      %vm367 = vcmask 27648
      %368 = vst.msk [vmem:[#allocation3] sm:$0xf] %vm367, %v343
      %369 = vst.msk [vmem:[#allocation3 + $0x4] sm:$0xf] %vm367, %v344
      %370 = vst.msk [vmem:[#allocation3 + $0x8] sm:$0xf] %vm367, %v345
      %371 = vst.msk [vmem:[#allocation3 + $0xc] sm:$0xf] %vm367, %v346
      %372 = vst.msk [vmem:[#allocation3 + $0x10] sm:$0xf] %vm367, %v347
      %373 = vst.msk [vmem:[#allocation3 + $0x14] sm:$0xf] %vm367, %v348
      %374 = vst.msk [vmem:[#allocation3 + $0x18] sm:$0xf] %vm367, %v349
      %375 = vst.msk [vmem:[#allocation3 + $0x1c] sm:$0xf] %vm367, %v350
      %376 = vst.msk [vmem:[#allocation3 + $0x20] sm:$0xf] %vm367, %v351
      %377 = vst.msk [vmem:[#allocation3 + $0x24] sm:$0xf] %vm367, %v352
      %378 = vst.msk [vmem:[#allocation3 + $0x28] sm:$0xf] %vm367, %v353
      %379 = vst.msk [vmem:[#allocation3 + $0x2c] sm:$0xf] %vm367, %v354
      %v380 = vld [vmem:[#allocation2 + $0x1] sm:$0xff]
      %v381 = vld [vmem:[#allocation2 + $0x9] sm:$0xff]
      %v382 = vld [vmem:[#allocation2 + $0x19] sm:$0xff]
      %v383 = vld [vmem:[#allocation2 + $0x21] sm:$0xff]
      %v384 = vld [vmem:[#allocation2 + $0x31] sm:$0xff]
      %v385 = vld [vmem:[#allocation2 + $0x39] sm:$0xff]
      %v386 = vld [vmem:[#allocation2 + $0x49] sm:$0xff]
      %v387 = vld [vmem:[#allocation2 + $0x51] sm:$0xff]
      %v388 = vld [vmem:[#allocation2 + $0x61] sm:$0xff]
      %v389 = vld [vmem:[#allocation2 + $0x69] sm:$0xff]
      %v390 = vld [vmem:[#allocation2 + $0x79] sm:$0xff]
      %v391 = vld [vmem:[#allocation2 + $0x81] sm:$0xff]
      %v392 = vpack.c.bf16 %v381, %v380
      %v393 = vpack.c.bf16 %v383, %v382
      %v394 = vpack.c.bf16 %v385, %v384
      %v395 = vpack.c.bf16 %v387, %v386
      %v396 = vpack.c.bf16 %v389, %v388
      %v397 = vpack.c.bf16 %v391, %v390
      %v404 = vunpack.c.l.b16 %v392
      %v405 = vunpack.c.h.b16 %v392
      %v406 = vunpack.c.l.b16 %v393
      %v407 = vunpack.c.h.b16 %v393
      %v408 = vunpack.c.l.b16 %v394
      %v409 = vunpack.c.h.b16 %v394
      %v410 = vunpack.c.l.b16 %v395
      %v411 = vunpack.c.h.b16 %v395
      %v412 = vunpack.c.l.b16 %v396
      %v413 = vunpack.c.h.b16 %v396
      %v414 = vunpack.c.l.b16 %v397
      %v415 = vunpack.c.h.b16 %v397
      %v416 = vpack.c.b16 %v404, %v404
      %v417 = vpack.c.b16 %v405, %v405
      %v418 = vpack.c.b16 %v406, %v406
      %v419 = vpack.c.b16 %v407, %v407
      %v420 = vpack.c.b16 %v408, %v408
      %v421 = vpack.c.b16 %v409, %v409
      %v422 = vpack.c.b16 %v410, %v410
      %v423 = vpack.c.b16 %v411, %v411
      %v424 = vpack.c.b16 %v412, %v412
      %v425 = vpack.c.b16 %v413, %v413
      %v426 = vpack.c.b16 %v414, %v414
      %v427 = vpack.c.b16 %v415, %v415
      %428 = vrot.lane.b32.xlu0 %v416, 4
      %v429 = vpop.permute.xlu0 %428
      %430 = vrot.lane.b32.xlu0 %v417, 4
      %v431 = vpop.permute.xlu0 %430
      %432 = vrot.lane.b32.xlu0 %v418, 4
      %v433 = vpop.permute.xlu0 %432
      %434 = vrot.lane.b32.xlu0 %v419, 4
      %v435 = vpop.permute.xlu0 %434
      %436 = vrot.lane.b32.xlu0 %v420, 4
      %v437 = vpop.permute.xlu0 %436
      %438 = vrot.lane.b32.xlu0 %v421, 4
      %v439 = vpop.permute.xlu0 %438
      %440 = vrot.lane.b32.xlu0 %v422, 4
      %v441 = vpop.permute.xlu0 %440
      %442 = vrot.lane.b32.xlu0 %v423, 4
      %v443 = vpop.permute.xlu0 %442
      %444 = vrot.lane.b32.xlu0 %v424, 4
      %v445 = vpop.permute.xlu0 %444
      %446 = vrot.lane.b32.xlu0 %v425, 4
      %v447 = vpop.permute.xlu0 %446
      %448 = vrot.lane.b32.xlu0 %v426, 4
      %v449 = vpop.permute.xlu0 %448
      %450 = vrot.lane.b32.xlu0 %v427, 4
      %v451 = vpop.permute.xlu0 %450
      %vm464 = vcmask 60448
      %465 = vst.msk [vmem:[#allocation3] sm:$0xf] %vm464, %v429
      %466 = vst.msk [vmem:[#allocation3 + $0x4] sm:$0xf] %vm464, %v431
      %467 = vst.msk [vmem:[#allocation3 + $0x8] sm:$0xf] %vm464, %v433
      %468 = vst.msk [vmem:[#allocation3 + $0xc] sm:$0xf] %vm464, %v435
      %469 = vst.msk [vmem:[#allocation3 + $0x10] sm:$0xf] %vm464, %v437
      %470 = vst.msk [vmem:[#allocation3 + $0x14] sm:$0xf] %vm464, %v439
      %471 = vst.msk [vmem:[#allocation3 + $0x18] sm:$0xf] %vm464, %v441
      %472 = vst.msk [vmem:[#allocation3 + $0x1c] sm:$0xf] %vm464, %v443
      %473 = vst.msk [vmem:[#allocation3 + $0x20] sm:$0xf] %vm464, %v445
      %474 = vst.msk [vmem:[#allocation3 + $0x24] sm:$0xf] %vm464, %v447
      %475 = vst.msk [vmem:[#allocation3 + $0x28] sm:$0xf] %vm464, %v449
      %476 = vst.msk [vmem:[#allocation3 + $0x2c] sm:$0xf] %vm464, %v451
      %v477 = vld [vmem:[#allocation2 + $0x2] sm:$0xff]
      %v478 = vld [vmem:[#allocation2 + $0xa] sm:$0xff]
      %v479 = vld [vmem:[#allocation2 + $0x1a] sm:$0xff]
      %v480 = vld [vmem:[#allocation2 + $0x22] sm:$0xff]
      %v481 = vld [vmem:[#allocation2 + $0x32] sm:$0xff]
      %v482 = vld [vmem:[#allocation2 + $0x3a] sm:$0xff]
      %v483 = vld [vmem:[#allocation2 + $0x4a] sm:$0xff]
      %v484 = vld [vmem:[#allocation2 + $0x52] sm:$0xff]
      %v485 = vld [vmem:[#allocation2 + $0x62] sm:$0xff]
      %v486 = vld [vmem:[#allocation2 + $0x6a] sm:$0xff]
      %v487 = vld [vmem:[#allocation2 + $0x7a] sm:$0xff]
      %v488 = vld [vmem:[#allocation2 + $0x82] sm:$0xff]
      %v489 = vpack.c.bf16 %v478, %v477
      %v490 = vpack.c.bf16 %v480, %v479
      %v491 = vpack.c.bf16 %v482, %v481
      %v492 = vpack.c.bf16 %v484, %v483
      %v493 = vpack.c.bf16 %v486, %v485
      %v494 = vpack.c.bf16 %v488, %v487
      %v501 = vunpack.c.l.b16 %v489
      %v502 = vunpack.c.h.b16 %v489
      %v503 = vunpack.c.l.b16 %v490
      %v504 = vunpack.c.h.b16 %v490
      %v505 = vunpack.c.l.b16 %v491
      %v506 = vunpack.c.h.b16 %v491
      %v507 = vunpack.c.l.b16 %v492
      %v508 = vunpack.c.h.b16 %v492
      %v509 = vunpack.c.l.b16 %v493
      %v510 = vunpack.c.h.b16 %v493
      %v511 = vunpack.c.l.b16 %v494
      %v512 = vunpack.c.h.b16 %v494
      %v513 = vpack.c.b16 %v501, %v501
      %v514 = vpack.c.b16 %v502, %v502
      %v515 = vpack.c.b16 %v503, %v503
      %v516 = vpack.c.b16 %v504, %v504
      %v517 = vpack.c.b16 %v505, %v505
      %v518 = vpack.c.b16 %v506, %v506
      %v519 = vpack.c.b16 %v507, %v507
      %v520 = vpack.c.b16 %v508, %v508
      %v521 = vpack.c.b16 %v509, %v509
      %v522 = vpack.c.b16 %v510, %v510
      %v523 = vpack.c.b16 %v511, %v511
      %v524 = vpack.c.b16 %v512, %v512
      %525 = vrot.lane.b32.xlu0 %v513, 8
      %v526 = vpop.permute.xlu0 %525
      %527 = vrot.lane.b32.xlu0 %v514, 8
      %v528 = vpop.permute.xlu0 %527
      %529 = vrot.lane.b32.xlu0 %v515, 8
      %v530 = vpop.permute.xlu0 %529
      %531 = vrot.lane.b32.xlu0 %v516, 8
      %v532 = vpop.permute.xlu0 %531
      %533 = vrot.lane.b32.xlu0 %v517, 8
      %v534 = vpop.permute.xlu0 %533
      %535 = vrot.lane.b32.xlu0 %v518, 8
      %v536 = vpop.permute.xlu0 %535
      %537 = vrot.lane.b32.xlu0 %v519, 8
      %v538 = vpop.permute.xlu0 %537
      %539 = vrot.lane.b32.xlu0 %v520, 8
      %v540 = vpop.permute.xlu0 %539
      %541 = vrot.lane.b32.xlu0 %v521, 8
      %v542 = vpop.permute.xlu0 %541
      %543 = vrot.lane.b32.xlu0 %v522, 8
      %v544 = vpop.permute.xlu0 %543
      %545 = vrot.lane.b32.xlu0 %v523, 8
      %v546 = vpop.permute.xlu0 %545
      %547 = vrot.lane.b32.xlu0 %v524, 8
      %v548 = vpop.permute.xlu0 %547
      %vm561 = vcmask 93248
      %562 = vst.msk [vmem:[#allocation3] sm:$0xf] %vm561, %v526
      %563 = vst.msk [vmem:[#allocation3 + $0x4] sm:$0xf] %vm561, %v528
      %564 = vst.msk [vmem:[#allocation3 + $0x8] sm:$0xf] %vm561, %v530
      %565 = vst.msk [vmem:[#allocation3 + $0xc] sm:$0xf] %vm561, %v532
      %566 = vst.msk [vmem:[#allocation3 + $0x10] sm:$0xf] %vm561, %v534
      %567 = vst.msk [vmem:[#allocation3 + $0x14] sm:$0xf] %vm561, %v536
      %568 = vst.msk [vmem:[#allocation3 + $0x18] sm:$0xf] %vm561, %v538
      %569 = vst.msk [vmem:[#allocation3 + $0x1c] sm:$0xf] %vm561, %v540
      %570 = vst.msk [vmem:[#allocation3 + $0x20] sm:$0xf] %vm561, %v542
      %571 = vst.msk [vmem:[#allocation3 + $0x24] sm:$0xf] %vm561, %v544
      %572 = vst.msk [vmem:[#allocation3 + $0x28] sm:$0xf] %vm561, %v546
      %573 = vst.msk [vmem:[#allocation3 + $0x2c] sm:$0xf] %vm561, %v548
      %s574 = scalar_lea.vmem [#allocation2], 24
      %v575 = vld [vmem:[%s574] sm:$0xff]
      %v576 = vld [vmem:[%s574 + $0x8] sm:$0xff]
      %v577 = vld [vmem:[%s574 + $0x18] sm:$0xff]
      %v578 = vld [vmem:[%s574 + $0x20] sm:$0xff]
      %v579 = vld [vmem:[%s574 + $0x30] sm:$0xff]
      %v580 = vld [vmem:[%s574 + $0x38] sm:$0xff]
      %v581 = vld [vmem:[%s574 + $0x48] sm:$0xff]
      %v582 = vld [vmem:[%s574 + $0x50] sm:$0xff]
      %v583 = vld [vmem:[%s574 + $0x60] sm:$0xff]
      %v584 = vld [vmem:[%s574 + $0x68] sm:$0xff]
      %v585 = vld [vmem:[%s574 + $0x78] sm:$0xff]
      %v586 = vld [vmem:[%s574 + $0x80] sm:$0xff]
      %v587 = vpack.c.bf16 %v576, %v575
      %v588 = vpack.c.bf16 %v578, %v577
      %v589 = vpack.c.bf16 %v580, %v579
      %v590 = vpack.c.bf16 %v582, %v581
      %v591 = vpack.c.bf16 %v584, %v583
      %v592 = vpack.c.bf16 %v586, %v585
      %v599 = vunpack.c.l.b16 %v587
      %v600 = vunpack.c.h.b16 %v587
      %v601 = vunpack.c.l.b16 %v588
      %v602 = vunpack.c.h.b16 %v588
      %v603 = vunpack.c.l.b16 %v589
      %v604 = vunpack.c.h.b16 %v589
      %v605 = vunpack.c.l.b16 %v590
      %v606 = vunpack.c.h.b16 %v590
      %v607 = vunpack.c.l.b16 %v591
      %v608 = vunpack.c.h.b16 %v591
      %v609 = vunpack.c.l.b16 %v592
      %v610 = vunpack.c.h.b16 %v592
      %v611 = vpack.c.b16 %v599, %v599
      %v612 = vpack.c.b16 %v600, %v600
      %v613 = vpack.c.b16 %v601, %v601
      %v614 = vpack.c.b16 %v602, %v602
      %v615 = vpack.c.b16 %v603, %v603
      %v616 = vpack.c.b16 %v604, %v604
      %v617 = vpack.c.b16 %v605, %v605
      %v618 = vpack.c.b16 %v606, %v606
      %v619 = vpack.c.b16 %v607, %v607
      %v620 = vpack.c.b16 %v608, %v608
      %v621 = vpack.c.b16 %v609, %v609
      %v622 = vpack.c.b16 %v610, %v610
      %623 = vrot.lane.b32.xlu0 %v611, 12
      %v624 = vpop.permute.xlu0 %623
      %625 = vrot.lane.b32.xlu0 %v612, 12
      %v626 = vpop.permute.xlu0 %625
      %627 = vrot.lane.b32.xlu0 %v613, 12
      %v628 = vpop.permute.xlu0 %627
      %629 = vrot.lane.b32.xlu0 %v614, 12
      %v630 = vpop.permute.xlu0 %629
      %631 = vrot.lane.b32.xlu0 %v615, 12
      %v632 = vpop.permute.xlu0 %631
      %633 = vrot.lane.b32.xlu0 %v616, 12
      %v634 = vpop.permute.xlu0 %633
      %635 = vrot.lane.b32.xlu0 %v617, 12
      %v636 = vpop.permute.xlu0 %635
      %637 = vrot.lane.b32.xlu0 %v618, 12
      %v638 = vpop.permute.xlu0 %637
      %639 = vrot.lane.b32.xlu0 %v619, 12
      %v640 = vpop.permute.xlu0 %639
      %641 = vrot.lane.b32.xlu0 %v620, 12
      %v642 = vpop.permute.xlu0 %641
      %643 = vrot.lane.b32.xlu0 %v621, 12
      %v644 = vpop.permute.xlu0 %643
      %645 = vrot.lane.b32.xlu0 %v622, 12
      %v646 = vpop.permute.xlu0 %645
      %vm659 = vcmask 126048
      %660 = vst.msk [vmem:[#allocation3] sm:$0xf] %vm659, %v624
      %661 = vst.msk [vmem:[#allocation3 + $0x4] sm:$0xf] %vm659, %v626
      %662 = vst.msk [vmem:[#allocation3 + $0x8] sm:$0xf] %vm659, %v628
      %663 = vst.msk [vmem:[#allocation3 + $0xc] sm:$0xf] %vm659, %v630
      %664 = vst.msk [vmem:[#allocation3 + $0x10] sm:$0xf] %vm659, %v632
      %665 = vst.msk [vmem:[#allocation3 + $0x14] sm:$0xf] %vm659, %v634
      %666 = vst.msk [vmem:[#allocation3 + $0x18] sm:$0xf] %vm659, %v636
      %667 = vst.msk [vmem:[#allocation3 + $0x1c] sm:$0xf] %vm659, %v638
      %668 = vst.msk [vmem:[#allocation3 + $0x20] sm:$0xf] %vm659, %v640
      %669 = vst.msk [vmem:[#allocation3 + $0x24] sm:$0xf] %vm659, %v642
      %670 = vst.msk [vmem:[#allocation3 + $0x28] sm:$0xf] %vm659, %v644
      %671 = vst.msk [vmem:[#allocation3 + $0x2c] sm:$0xf] %vm659, %v646
      %v672 = vld [vmem:[%s574 + $0x1] sm:$0xff]
      %v673 = vld [vmem:[%s574 + $0x9] sm:$0xff]
      %v674 = vld [vmem:[%s574 + $0x19] sm:$0xff]
      %v675 = vld [vmem:[%s574 + $0x21] sm:$0xff]
      %v676 = vld [vmem:[%s574 + $0x31] sm:$0xff]
      %v677 = vld [vmem:[%s574 + $0x39] sm:$0xff]
      %v678 = vld [vmem:[%s574 + $0x49] sm:$0xff]
      %v679 = vld [vmem:[%s574 + $0x51] sm:$0xff]
      %v680 = vld [vmem:[%s574 + $0x61] sm:$0xff]
      %v681 = vld [vmem:[%s574 + $0x69] sm:$0xff]
      %v682 = vld [vmem:[%s574 + $0x79] sm:$0xff]
      %v683 = vld [vmem:[%s574 + $0x81] sm:$0xff]
      %v684 = vpack.c.bf16 %v673, %v672
      %v685 = vpack.c.bf16 %v675, %v674
      %v686 = vpack.c.bf16 %v677, %v676
      %v687 = vpack.c.bf16 %v679, %v678
      %v688 = vpack.c.bf16 %v681, %v680
      %v689 = vpack.c.bf16 %v683, %v682
      %v696 = vunpack.c.l.b16 %v684
      %v697 = vunpack.c.h.b16 %v684
      %v698 = vunpack.c.l.b16 %v685
      %v699 = vunpack.c.h.b16 %v685
      %v700 = vunpack.c.l.b16 %v686
      %v701 = vunpack.c.h.b16 %v686
      %v702 = vunpack.c.l.b16 %v687
      %v703 = vunpack.c.h.b16 %v687
      %v704 = vunpack.c.l.b16 %v688
      %v705 = vunpack.c.h.b16 %v688
      %v706 = vunpack.c.l.b16 %v689
      %v707 = vunpack.c.h.b16 %v689
      %v708 = vpack.c.b16 %v696, %v696
      %v709 = vpack.c.b16 %v697, %v697
      %v710 = vpack.c.b16 %v698, %v698
      %v711 = vpack.c.b16 %v699, %v699
      %v712 = vpack.c.b16 %v700, %v700
      %v713 = vpack.c.b16 %v701, %v701
      %v714 = vpack.c.b16 %v702, %v702
      %v715 = vpack.c.b16 %v703, %v703
      %v716 = vpack.c.b16 %v704, %v704
      %v717 = vpack.c.b16 %v705, %v705
      %v718 = vpack.c.b16 %v706, %v706
      %v719 = vpack.c.b16 %v707, %v707
      %720 = vrot.lane.b32.xlu0 %v708, 16
      %v721 = vpop.permute.xlu0 %720
      %722 = vrot.lane.b32.xlu0 %v709, 16
      %v723 = vpop.permute.xlu0 %722
      %724 = vrot.lane.b32.xlu0 %v710, 16
      %v725 = vpop.permute.xlu0 %724
      %726 = vrot.lane.b32.xlu0 %v711, 16
      %v727 = vpop.permute.xlu0 %726
      %728 = vrot.lane.b32.xlu0 %v712, 16
      %v729 = vpop.permute.xlu0 %728
      %730 = vrot.lane.b32.xlu0 %v713, 16
      %v731 = vpop.permute.xlu0 %730
      %732 = vrot.lane.b32.xlu0 %v714, 16
      %v733 = vpop.permute.xlu0 %732
      %734 = vrot.lane.b32.xlu0 %v715, 16
      %v735 = vpop.permute.xlu0 %734
      %736 = vrot.lane.b32.xlu0 %v716, 16
      %v737 = vpop.permute.xlu0 %736
      %738 = vrot.lane.b32.xlu0 %v717, 16
      %v739 = vpop.permute.xlu0 %738
      %740 = vrot.lane.b32.xlu0 %v718, 16
      %v741 = vpop.permute.xlu0 %740
      %742 = vrot.lane.b32.xlu0 %v719, 16
      %v743 = vpop.permute.xlu0 %742
      %vm756 = vcmask 158848
      %757 = vst.msk [vmem:[#allocation3] sm:$0xf] %vm756, %v721
      %758 = vst.msk [vmem:[#allocation3 + $0x4] sm:$0xf] %vm756, %v723
      %759 = vst.msk [vmem:[#allocation3 + $0x8] sm:$0xf] %vm756, %v725
      %760 = vst.msk [vmem:[#allocation3 + $0xc] sm:$0xf] %vm756, %v727
      %761 = vst.msk [vmem:[#allocation3 + $0x10] sm:$0xf] %vm756, %v729
      %762 = vst.msk [vmem:[#allocation3 + $0x14] sm:$0xf] %vm756, %v731
      %763 = vst.msk [vmem:[#allocation3 + $0x18] sm:$0xf] %vm756, %v733
      %764 = vst.msk [vmem:[#allocation3 + $0x1c] sm:$0xf] %vm756, %v735
      %765 = vst.msk [vmem:[#allocation3 + $0x20] sm:$0xf] %vm756, %v737
      %766 = vst.msk [vmem:[#allocation3 + $0x24] sm:$0xf] %vm756, %v739
      %767 = vst.msk [vmem:[#allocation3 + $0x28] sm:$0xf] %vm756, %v741
      %768 = vst.msk [vmem:[#allocation3 + $0x2c] sm:$0xf] %vm756, %v743
      %v769 = vld [vmem:[%s574 + $0x2] sm:$0xff]
      %v770 = vld [vmem:[%s574 + $0xa] sm:$0xff]
      %v771 = vld [vmem:[%s574 + $0x1a] sm:$0xff]
      %v772 = vld [vmem:[%s574 + $0x22] sm:$0xff]
      %v773 = vld [vmem:[%s574 + $0x32] sm:$0xff]
      %v774 = vld [vmem:[%s574 + $0x3a] sm:$0xff]
      %v775 = vld [vmem:[%s574 + $0x4a] sm:$0xff]
      %v776 = vld [vmem:[%s574 + $0x52] sm:$0xff]
      %v777 = vld [vmem:[%s574 + $0x62] sm:$0xff]
      %v778 = vld [vmem:[%s574 + $0x6a] sm:$0xff]
      %v779 = vld [vmem:[%s574 + $0x7a] sm:$0xff]
      %v780 = vld [vmem:[%s574 + $0x82] sm:$0xff]
      %v781 = vpack.c.bf16 %v770, %v769
      %v782 = vpack.c.bf16 %v772, %v771
      %v783 = vpack.c.bf16 %v774, %v773
      %v784 = vpack.c.bf16 %v776, %v775
      %v785 = vpack.c.bf16 %v778, %v777
      %v786 = vpack.c.bf16 %v780, %v779
      %v793 = vunpack.c.l.b16 %v781
      %v794 = vunpack.c.h.b16 %v781
      %v795 = vunpack.c.l.b16 %v782
      %v796 = vunpack.c.h.b16 %v782
      %v797 = vunpack.c.l.b16 %v783
      %v798 = vunpack.c.h.b16 %v783
      %v799 = vunpack.c.l.b16 %v784
      %v800 = vunpack.c.h.b16 %v784
      %v801 = vunpack.c.l.b16 %v785
      %v802 = vunpack.c.h.b16 %v785
      %v803 = vunpack.c.l.b16 %v786
      %v804 = vunpack.c.h.b16 %v786
      %v805 = vpack.c.b16 %v793, %v793
      %v806 = vpack.c.b16 %v794, %v794
      %v807 = vpack.c.b16 %v795, %v795
      %v808 = vpack.c.b16 %v796, %v796
      %v809 = vpack.c.b16 %v797, %v797
      %v810 = vpack.c.b16 %v798, %v798
      %v811 = vpack.c.b16 %v799, %v799
      %v812 = vpack.c.b16 %v800, %v800
      %v813 = vpack.c.b16 %v801, %v801
      %v814 = vpack.c.b16 %v802, %v802
      %v815 = vpack.c.b16 %v803, %v803
      %v816 = vpack.c.b16 %v804, %v804
      %817 = vrot.lane.b32.xlu0 %v805, 20
      %v818 = vpop.permute.xlu0 %817
      %819 = vrot.lane.b32.xlu0 %v806, 20
      %v820 = vpop.permute.xlu0 %819
      %821 = vrot.lane.b32.xlu0 %v807, 20
      %v822 = vpop.permute.xlu0 %821
      %823 = vrot.lane.b32.xlu0 %v808, 20
      %v824 = vpop.permute.xlu0 %823
      %825 = vrot.lane.b32.xlu0 %v809, 20
      %v826 = vpop.permute.xlu0 %825
      %827 = vrot.lane.b32.xlu0 %v810, 20
      %v828 = vpop.permute.xlu0 %827
      %829 = vrot.lane.b32.xlu0 %v811, 20
      %v830 = vpop.permute.xlu0 %829
      %831 = vrot.lane.b32.xlu0 %v812, 20
      %v832 = vpop.permute.xlu0 %831
      %833 = vrot.lane.b32.xlu0 %v813, 20
      %v834 = vpop.permute.xlu0 %833
      %835 = vrot.lane.b32.xlu0 %v814, 20
      %v836 = vpop.permute.xlu0 %835
      %837 = vrot.lane.b32.xlu0 %v815, 20
      %v838 = vpop.permute.xlu0 %837
      %839 = vrot.lane.b32.xlu0 %v816, 20
      %v840 = vpop.permute.xlu0 %839
      %vm853 = vcmask 191648
      %854 = vst.msk [vmem:[#allocation3] sm:$0xf] %vm853, %v818
      %855 = vst.msk [vmem:[#allocation3 + $0x4] sm:$0xf] %vm853, %v820
      %856 = vst.msk [vmem:[#allocation3 + $0x8] sm:$0xf] %vm853, %v822
      %857 = vst.msk [vmem:[#allocation3 + $0xc] sm:$0xf] %vm853, %v824
      %858 = vst.msk [vmem:[#allocation3 + $0x10] sm:$0xf] %vm853, %v826
      %859 = vst.msk [vmem:[#allocation3 + $0x14] sm:$0xf] %vm853, %v828
      %860 = vst.msk [vmem:[#allocation3 + $0x18] sm:$0xf] %vm853, %v830
      %861 = vst.msk [vmem:[#allocation3 + $0x1c] sm:$0xf] %vm853, %v832
      %862 = vst.msk [vmem:[#allocation3 + $0x20] sm:$0xf] %vm853, %v834
      %863 = vst.msk [vmem:[#allocation3 + $0x24] sm:$0xf] %vm853, %v836
      %864 = vst.msk [vmem:[#allocation3 + $0x28] sm:$0xf] %vm853, %v838
      %865 = vst.msk [vmem:[#allocation3 + $0x2c] sm:$0xf] %vm853, %v840
      %s866 = scalar_lea.vmem [#allocation2], 48
      %v867 = vld [vmem:[%s866] sm:$0xff]
      %v868 = vld [vmem:[%s866 + $0x8] sm:$0xff]
      %v869 = vld [vmem:[%s866 + $0x18] sm:$0xff]
      %v870 = vld [vmem:[%s866 + $0x20] sm:$0xff]
      %v871 = vld [vmem:[%s866 + $0x30] sm:$0xff]
      %v872 = vld [vmem:[%s866 + $0x38] sm:$0xff]
      %v873 = vld [vmem:[%s866 + $0x48] sm:$0xff]
      %v874 = vld [vmem:[%s866 + $0x50] sm:$0xff]
      %v875 = vld [vmem:[%s866 + $0x60] sm:$0xff]
      %v876 = vld [vmem:[%s866 + $0x68] sm:$0xff]
      %v877 = vld [vmem:[%s866 + $0x78] sm:$0xff]
      %v878 = vld [vmem:[%s866 + $0x80] sm:$0xff]
      %v879 = vpack.c.bf16 %v868, %v867
      %v880 = vpack.c.bf16 %v870, %v869
      %v881 = vpack.c.bf16 %v872, %v871
      %v882 = vpack.c.bf16 %v874, %v873
      %v883 = vpack.c.bf16 %v876, %v875
      %v884 = vpack.c.bf16 %v878, %v877
      %v891 = vunpack.c.l.b16 %v879
      %v892 = vunpack.c.h.b16 %v879
      %v893 = vunpack.c.l.b16 %v880
      %v894 = vunpack.c.h.b16 %v880
      %v895 = vunpack.c.l.b16 %v881
      %v896 = vunpack.c.h.b16 %v881
      %v897 = vunpack.c.l.b16 %v882
      %v898 = vunpack.c.h.b16 %v882
      %v899 = vunpack.c.l.b16 %v883
      %v900 = vunpack.c.h.b16 %v883
      %v901 = vunpack.c.l.b16 %v884
      %v902 = vunpack.c.h.b16 %v884
      %v903 = vpack.c.b16 %v891, %v891
      %v904 = vpack.c.b16 %v892, %v892
      %v905 = vpack.c.b16 %v893, %v893
      %v906 = vpack.c.b16 %v894, %v894
      %v907 = vpack.c.b16 %v895, %v895
      %v908 = vpack.c.b16 %v896, %v896
      %v909 = vpack.c.b16 %v897, %v897
      %v910 = vpack.c.b16 %v898, %v898
      %v911 = vpack.c.b16 %v899, %v899
      %v912 = vpack.c.b16 %v900, %v900
      %v913 = vpack.c.b16 %v901, %v901
      %v914 = vpack.c.b16 %v902, %v902
      %915 = vrot.lane.b32.xlu0 %v903, 24
      %v916 = vpop.permute.xlu0 %915
      %917 = vrot.lane.b32.xlu0 %v904, 24
      %v918 = vpop.permute.xlu0 %917
      %919 = vrot.lane.b32.xlu0 %v905, 24
      %v920 = vpop.permute.xlu0 %919
      %921 = vrot.lane.b32.xlu0 %v906, 24
      %v922 = vpop.permute.xlu0 %921
      %923 = vrot.lane.b32.xlu0 %v907, 24
      %v924 = vpop.permute.xlu0 %923
      %925 = vrot.lane.b32.xlu0 %v908, 24
      %v926 = vpop.permute.xlu0 %925
      %927 = vrot.lane.b32.xlu0 %v909, 24
      %v928 = vpop.permute.xlu0 %927
      %929 = vrot.lane.b32.xlu0 %v910, 24
      %v930 = vpop.permute.xlu0 %929
      %931 = vrot.lane.b32.xlu0 %v911, 24
      %v932 = vpop.permute.xlu0 %931
      %933 = vrot.lane.b32.xlu0 %v912, 24
      %v934 = vpop.permute.xlu0 %933
      %935 = vrot.lane.b32.xlu0 %v913, 24
      %v936 = vpop.permute.xlu0 %935
      %937 = vrot.lane.b32.xlu0 %v914, 24
      %v938 = vpop.permute.xlu0 %937
      %vm951 = vcmask 224448
      %952 = vst.msk [vmem:[#allocation3] sm:$0xf] %vm951, %v916
      %953 = vst.msk [vmem:[#allocation3 + $0x4] sm:$0xf] %vm951, %v918
      %954 = vst.msk [vmem:[#allocation3 + $0x8] sm:$0xf] %vm951, %v920
      %955 = vst.msk [vmem:[#allocation3 + $0xc] sm:$0xf] %vm951, %v922
      %956 = vst.msk [vmem:[#allocation3 + $0x10] sm:$0xf] %vm951, %v924
      %957 = vst.msk [vmem:[#allocation3 + $0x14] sm:$0xf] %vm951, %v926
      %958 = vst.msk [vmem:[#allocation3 + $0x18] sm:$0xf] %vm951, %v928
      %959 = vst.msk [vmem:[#allocation3 + $0x1c] sm:$0xf] %vm951, %v930
      %960 = vst.msk [vmem:[#allocation3 + $0x20] sm:$0xf] %vm951, %v932
      %961 = vst.msk [vmem:[#allocation3 + $0x24] sm:$0xf] %vm951, %v934
      %962 = vst.msk [vmem:[#allocation3 + $0x28] sm:$0xf] %vm951, %v936
      %963 = vst.msk [vmem:[#allocation3 + $0x2c] sm:$0xf] %vm951, %v938
      %v964 = vld [vmem:[%s866 + $0x1] sm:$0xff]
      %v965 = vld [vmem:[%s866 + $0x9] sm:$0xff]
      %v966 = vld [vmem:[%s866 + $0x19] sm:$0xff]
      %v967 = vld [vmem:[%s866 + $0x21] sm:$0xff]
      %v968 = vld [vmem:[%s866 + $0x31] sm:$0xff]
      %v969 = vld [vmem:[%s866 + $0x39] sm:$0xff]
      %v970 = vld [vmem:[%s866 + $0x49] sm:$0xff]
      %v971 = vld [vmem:[%s866 + $0x51] sm:$0xff]
      %v972 = vld [vmem:[%s866 + $0x61] sm:$0xff]
      %v973 = vld [vmem:[%s866 + $0x69] sm:$0xff]
      %v974 = vld [vmem:[%s866 + $0x79] sm:$0xff]
      %v975 = vld [vmem:[%s866 + $0x81] sm:$0xff]
      %v976 = vpack.c.bf16 %v965, %v964
      %v977 = vpack.c.bf16 %v967, %v966
      %v978 = vpack.c.bf16 %v969, %v968
      %v979 = vpack.c.bf16 %v971, %v970
      %v980 = vpack.c.bf16 %v973, %v972
      %v981 = vpack.c.bf16 %v975, %v974
      %v988 = vunpack.c.l.b16 %v976
      %v989 = vunpack.c.h.b16 %v976
      %v990 = vunpack.c.l.b16 %v977
      %v991 = vunpack.c.h.b16 %v977
      %v992 = vunpack.c.l.b16 %v978
      %v993 = vunpack.c.h.b16 %v978
      %v994 = vunpack.c.l.b16 %v979
      %v995 = vunpack.c.h.b16 %v979
      %v996 = vunpack.c.l.b16 %v980
      %v997 = vunpack.c.h.b16 %v980
      %v998 = vunpack.c.l.b16 %v981
      %v999 = vunpack.c.h.b16 %v981
      %v1000 = vpack.c.b16 %v988, %v988
      %v1001 = vpack.c.b16 %v989, %v989
      %v1002 = vpack.c.b16 %v990, %v990
      %v1003 = vpack.c.b16 %v991, %v991
      %v1004 = vpack.c.b16 %v992, %v992
      %v1005 = vpack.c.b16 %v993, %v993
      %v1006 = vpack.c.b16 %v994, %v994
      %v1007 = vpack.c.b16 %v995, %v995
      %v1008 = vpack.c.b16 %v996, %v996
      %v1009 = vpack.c.b16 %v997, %v997
      %v1010 = vpack.c.b16 %v998, %v998
      %v1011 = vpack.c.b16 %v999, %v999
      %1012 = vrot.lane.b32.xlu0 %v1000, 28
      %v1013 = vpop.permute.xlu0 %1012
      %1014 = vrot.lane.b32.xlu0 %v1001, 28
      %v1015 = vpop.permute.xlu0 %1014
      %1016 = vrot.lane.b32.xlu0 %v1002, 28
      %v1017 = vpop.permute.xlu0 %1016
      %1018 = vrot.lane.b32.xlu0 %v1003, 28
      %v1019 = vpop.permute.xlu0 %1018
      %1020 = vrot.lane.b32.xlu0 %v1004, 28
      %v1021 = vpop.permute.xlu0 %1020
      %1022 = vrot.lane.b32.xlu0 %v1005, 28
      %v1023 = vpop.permute.xlu0 %1022
      %1024 = vrot.lane.b32.xlu0 %v1006, 28
      %v1025 = vpop.permute.xlu0 %1024
      %1026 = vrot.lane.b32.xlu0 %v1007, 28
      %v1027 = vpop.permute.xlu0 %1026
      %1028 = vrot.lane.b32.xlu0 %v1008, 28
      %v1029 = vpop.permute.xlu0 %1028
      %1030 = vrot.lane.b32.xlu0 %v1009, 28
      %v1031 = vpop.permute.xlu0 %1030
      %1032 = vrot.lane.b32.xlu0 %v1010, 28
      %v1033 = vpop.permute.xlu0 %1032
      %1034 = vrot.lane.b32.xlu0 %v1011, 28
      %v1035 = vpop.permute.xlu0 %1034
      %vm1048 = vcmask 257248
      %1049 = vst.msk [vmem:[#allocation3] sm:$0xf] %vm1048, %v1013
      %1050 = vst.msk [vmem:[#allocation3 + $0x4] sm:$0xf] %vm1048, %v1015
      %1051 = vst.msk [vmem:[#allocation3 + $0x8] sm:$0xf] %vm1048, %v1017
      %1052 = vst.msk [vmem:[#allocation3 + $0xc] sm:$0xf] %vm1048, %v1019
      %1053 = vst.msk [vmem:[#allocation3 + $0x10] sm:$0xf] %vm1048, %v1021
      %1054 = vst.msk [vmem:[#allocation3 + $0x14] sm:$0xf] %vm1048, %v1023
      %1055 = vst.msk [vmem:[#allocation3 + $0x18] sm:$0xf] %vm1048, %v1025
      %1056 = vst.msk [vmem:[#allocation3 + $0x1c] sm:$0xf] %vm1048, %v1027
      %1057 = vst.msk [vmem:[#allocation3 + $0x20] sm:$0xf] %vm1048, %v1029
      %1058 = vst.msk [vmem:[#allocation3 + $0x24] sm:$0xf] %vm1048, %v1031
      %1059 = vst.msk [vmem:[#allocation3 + $0x28] sm:$0xf] %vm1048, %v1033
      %1060 = vst.msk [vmem:[#allocation3 + $0x2c] sm:$0xf] %vm1048, %v1035
      %v1061 = vld [vmem:[%s866 + $0x2] sm:$0xff]
      %v1062 = vld [vmem:[%s866 + $0xa] sm:$0xff]
      %v1063 = vld [vmem:[%s866 + $0x1a] sm:$0xff]
      %v1064 = vld [vmem:[%s866 + $0x22] sm:$0xff]
      %v1065 = vld [vmem:[%s866 + $0x32] sm:$0xff]
      %v1066 = vld [vmem:[%s866 + $0x3a] sm:$0xff]
      %v1067 = vld [vmem:[%s866 + $0x4a] sm:$0xff]
      %v1068 = vld [vmem:[%s866 + $0x52] sm:$0xff]
      %v1069 = vld [vmem:[%s866 + $0x62] sm:$0xff]
      %v1070 = vld [vmem:[%s866 + $0x6a] sm:$0xff]
      %v1071 = vld [vmem:[%s866 + $0x7a] sm:$0xff]
      %v1072 = vld [vmem:[%s866 + $0x82] sm:$0xff]
      %v1073 = vpack.c.bf16 %v1062, %v1061
      %v1074 = vpack.c.bf16 %v1064, %v1063
      %v1075 = vpack.c.bf16 %v1066, %v1065
      %v1076 = vpack.c.bf16 %v1068, %v1067
      %v1077 = vpack.c.bf16 %v1070, %v1069
      %v1078 = vpack.c.bf16 %v1072, %v1071
      %v1085 = vunpack.c.l.b16 %v1073
      %v1086 = vunpack.c.h.b16 %v1073
      %v1087 = vunpack.c.l.b16 %v1074
      %v1088 = vunpack.c.h.b16 %v1074
      %v1089 = vunpack.c.l.b16 %v1075
      %v1090 = vunpack.c.h.b16 %v1075
      %v1091 = vunpack.c.l.b16 %v1076
      %v1092 = vunpack.c.h.b16 %v1076
      %v1093 = vunpack.c.l.b16 %v1077
      %v1094 = vunpack.c.h.b16 %v1077
      %v1095 = vunpack.c.l.b16 %v1078
      %v1096 = vunpack.c.h.b16 %v1078
      %v1097 = vpack.c.b16 %v1085, %v1085
      %v1098 = vpack.c.b16 %v1086, %v1086
      %v1099 = vpack.c.b16 %v1087, %v1087
      %v1100 = vpack.c.b16 %v1088, %v1088
      %v1101 = vpack.c.b16 %v1089, %v1089
      %v1102 = vpack.c.b16 %v1090, %v1090
      %v1103 = vpack.c.b16 %v1091, %v1091
      %v1104 = vpack.c.b16 %v1092, %v1092
      %v1105 = vpack.c.b16 %v1093, %v1093
      %v1106 = vpack.c.b16 %v1094, %v1094
      %v1107 = vpack.c.b16 %v1095, %v1095
      %v1108 = vpack.c.b16 %v1096, %v1096
      %1109 = vrot.lane.b32.xlu0 %v1097, 32
      %v1110 = vpop.permute.xlu0 %1109
      %1111 = vrot.lane.b32.xlu0 %v1098, 32
      %v1112 = vpop.permute.xlu0 %1111
      %1113 = vrot.lane.b32.xlu0 %v1099, 32
      %v1114 = vpop.permute.xlu0 %1113
      %1115 = vrot.lane.b32.xlu0 %v1100, 32
      %v1116 = vpop.permute.xlu0 %1115
      %1117 = vrot.lane.b32.xlu0 %v1101, 32
      %v1118 = vpop.permute.xlu0 %1117
      %1119 = vrot.lane.b32.xlu0 %v1102, 32
      %v1120 = vpop.permute.xlu0 %1119
      %1121 = vrot.lane.b32.xlu0 %v1103, 32
      %v1122 = vpop.permute.xlu0 %1121
      %1123 = vrot.lane.b32.xlu0 %v1104, 32
      %v1124 = vpop.permute.xlu0 %1123
      %1125 = vrot.lane.b32.xlu0 %v1105, 32
      %v1126 = vpop.permute.xlu0 %1125
      %1127 = vrot.lane.b32.xlu0 %v1106, 32
      %v1128 = vpop.permute.xlu0 %1127
      %1129 = vrot.lane.b32.xlu0 %v1107, 32
      %v1130 = vpop.permute.xlu0 %1129
      %1131 = vrot.lane.b32.xlu0 %v1108, 32
      %v1132 = vpop.permute.xlu0 %1131
      %vm1145 = vcmask 290048
      %1146 = vst.msk [vmem:[#allocation3] sm:$0xf] %vm1145, %v1110
      %1147 = vst.msk [vmem:[#allocation3 + $0x4] sm:$0xf] %vm1145, %v1112
      %1148 = vst.msk [vmem:[#allocation3 + $0x8] sm:$0xf] %vm1145, %v1114
      %1149 = vst.msk [vmem:[#allocation3 + $0xc] sm:$0xf] %vm1145, %v1116
      %1150 = vst.msk [vmem:[#allocation3 + $0x10] sm:$0xf] %vm1145, %v1118
      %1151 = vst.msk [vmem:[#allocation3 + $0x14] sm:$0xf] %vm1145, %v1120
      %1152 = vst.msk [vmem:[#allocation3 + $0x18] sm:$0xf] %vm1145, %v1122
      %1153 = vst.msk [vmem:[#allocation3 + $0x1c] sm:$0xf] %vm1145, %v1124
      %1154 = vst.msk [vmem:[#allocation3 + $0x20] sm:$0xf] %vm1145, %v1126
      %1155 = vst.msk [vmem:[#allocation3 + $0x24] sm:$0xf] %vm1145, %v1128
      %1156 = vst.msk [vmem:[#allocation3 + $0x28] sm:$0xf] %vm1145, %v1130
      %1157 = vst.msk [vmem:[#allocation3 + $0x2c] sm:$0xf] %vm1145, %v1132
      %v1158 = vld [vmem:[#allocation3] sm:$0xf]
      %v1159 = vld [vmem:[#allocation3 + $0x4] sm:$0xf]
      %v1160 = vld [vmem:[#allocation3 + $0x8] sm:$0xf]
      %v1161 = vld [vmem:[#allocation3 + $0xc] sm:$0xf]
      %v1162 = vld [vmem:[#allocation3 + $0x10] sm:$0xf]
      %v1163 = vld [vmem:[#allocation3 + $0x14] sm:$0xf]
      %v1164 = vld [vmem:[#allocation3 + $0x18] sm:$0xf]
      %v1165 = vld [vmem:[#allocation3 + $0x1c] sm:$0xf]
      %v1166 = vld [vmem:[#allocation3 + $0x20] sm:$0xf]
      %v1167 = vld [vmem:[#allocation3 + $0x24] sm:$0xf]
      %v1168 = vld [vmem:[#allocation3 + $0x28] sm:$0xf]
      %v1169 = vld [vmem:[#allocation3 + $0x2c] sm:$0xf]
      %v1170 = vld [vmem:[%s1] sm:$0xf]
      %v1171 = vld [vmem:[%s1 + $0x4] sm:$0xf]
      %v1172 = vld [vmem:[%s1 + $0x8] sm:$0xf]
      %v1173 = vld [vmem:[%s1 + $0xc] sm:$0xf]
      %v1174 = vld [vmem:[%s1 + $0x10] sm:$0x3]
      %v1175 = vld [vmem:[%s2] sm:$0x1]
      %v1177 = vlaneseq
      %v1178 = vshrl.u32 %v1177, 7
      %v1179 = vsub.s32 0, %v1178
      %v1180 = vrot.slane %v1175, %v1179
      %v1194 = vunpack.c.l.b16 %v1158
      %v1195 = vunpack.c.l.b16 %v1159
      %v1196 = vunpack.c.l.b16 %v1160
      %v1197 = vunpack.c.l.b16 %v1161
      %v1198 = vunpack.c.l.b16 %v1162
      %v1199 = vunpack.c.l.b16 %v1163
      %v1200 = vunpack.c.l.b16 %v1164
      %v1201 = vunpack.c.l.b16 %v1165
      %v1202 = vunpack.c.l.b16 %v1166
      %v1203 = vunpack.c.l.b16 %v1167
      %v1204 = vunpack.c.l.b16 %v1168
      %v1205 = vunpack.c.l.b16 %v1169
      %v1206 = vpack.c.b16 %v1195, %v1194
      %v1207 = vpack.c.b16 %v1197, %v1196
      %v1208 = vpack.c.b16 %v1199, %v1198
      %v1209 = vpack.c.b16 %v1201, %v1200
      %v1210 = vpack.c.b16 %v1203, %v1202
      %v1211 = vpack.c.b16 %v1205, %v1204
      %v1217 = vunpack.c.l.b16 %v1170
      %v1218 = vunpack.c.l.b16 %v1171
      %v1219 = vunpack.c.l.b16 %v1172
      %v1220 = vunpack.c.l.b16 %v1173
      %v1221 = vunpack.c.l.b16 %v1174
      %v1222 = vpack.c.b16 %v1218, %v1217
      %v1223 = vpack.c.b16 %v1220, %v1219
      %v1224 = vpack.c.b16 %v1221, %v1221
      %vm1227 = vcmask 293888
      %v1229 = vsel %vm1227, %v1206, 0
      %v1232 = vsel %vm1227, %v1207, 0
      %v1235 = vsel %vm1227, %v1208, 0
      %v1238 = vsel %vm1227, %v1209, 0
      %v1241 = vsel %vm1227, %v1210, 0
      %v1244 = vsel %vm1227, %v1211, 0
      %vm1246 = vcmask 1041408
      %v1248 = vsel %vm1246, %v1224, 0
      %1250 = vmatprep.subr.bf16.mxu0 0
      %1251 = vmatpush1.bf16.msra.mxu0 0
      %1252 = vmatprep.subr.bf16.mxu0 0
      %1253 = vmatpush1.bf16.msra.mxu0 0
      %1254 = vmatprep.subr.bf16.mxu0 0
      %1255 = vmatpush1.bf16.msra.mxu0 0
      %1256 = vmatprep.subr.bf16.mxu0 0
      %1257 = vmatpush1.bf16.msra.mxu0 0
      %1258 = vmatprep.subr.bf16.mxu0 0
      %1259 = vmatpush1.bf16.msra.mxu0 0
      %1260 = vmatprep.subr.bf16.mxu0 0
      %1261 = vmatpush1.bf16.msra.mxu0 %v1248
      %1262 = vmatprep.subr.bf16.mxu0 0
      %1263 = vmatpush1.bf16.msra.mxu0 %v1223
      %1264 = vmatprep.subr.bf16.mxu0 0
      %1265 = vmatpush1.bf16.msra.mxu0 %v1222
      %1266 = vmatprep.subr.bf16.mxu0 0
      %1267 = vmatpush2.bf16.msra.mxu0 0
      %1268 = vmatprep.subr.bf16.mxu0 0
      %1269 = vmatpush2.bf16.msra.mxu0 0
      %1270 = vmatprep.subr.bf16.mxu0 0
      %1271 = vmatpush2.bf16.msra.mxu0 0
      %1272 = vmatprep.subr.bf16.mxu0 0
      %1273 = vmatpush2.bf16.msra.mxu0 0
      %1274 = vmatprep.subr.bf16.mxu0 0
      %1275 = vmatpush2.bf16.msra.mxu0 0
      %1276 = vmatprep.subr.bf16.mxu0 0
      %1277 = vmatpush2.bf16.msra.mxu0 0
      %1278 = vmatprep.subr.bf16.mxu0 0
      %1279 = vmatpush2.bf16.msra.mxu0 0
      %1280 = vmatprep.subr.bf16.mxu0 0
      %1281 = vmatpush2.bf16.msra.mxu0 0
      %1282 = vmatprep.mubr.bf16.mxu0 0
      %1283 = vmatmul.mubr.bf16.gmra.mxu0 %v1229
      %v1284 = vpop.f32.mrf.mxu0
      %v1285 = vadd.f32 %v1180, %v1284
      %v1286 = vpop.f32.mrf.mxu0
      %v1287 = vpop.f32.mrf.mxu0
      %v1288 = vadd.f32 %v1180, %v1287
      %v1289 = vpop.f32.mrf.mxu0
      %1290 = vmatprep.mubr.bf16.mxu0 0
      %1291 = vmatmul.mubr.bf16.gmra.mxu0 %v1232
      %v1292 = vpop.f32.mrf.mxu0
      %v1293 = vadd.f32 %v1180, %v1292
      %v1294 = vpop.f32.mrf.mxu0
      %v1295 = vpop.f32.mrf.mxu0
      %v1296 = vadd.f32 %v1180, %v1295
      %v1297 = vpop.f32.mrf.mxu0
      %1298 = vmatprep.mubr.bf16.mxu0 0
      %1299 = vmatmul.mubr.bf16.gmra.mxu0 %v1235
      %v1300 = vpop.f32.mrf.mxu0
      %v1301 = vadd.f32 %v1180, %v1300
      %v1302 = vpop.f32.mrf.mxu0
      %v1303 = vpop.f32.mrf.mxu0
      %v1304 = vadd.f32 %v1180, %v1303
      %v1305 = vpop.f32.mrf.mxu0
      %1306 = vmatprep.mubr.bf16.mxu0 0
      %1307 = vmatmul.mubr.bf16.gmra.mxu0 %v1238
      %v1308 = vpop.f32.mrf.mxu0
      %v1309 = vadd.f32 %v1180, %v1308
      %v1310 = vpop.f32.mrf.mxu0
      %v1311 = vpop.f32.mrf.mxu0
      %v1312 = vadd.f32 %v1180, %v1311
      %v1313 = vpop.f32.mrf.mxu0
      %1314 = vmatprep.mubr.bf16.mxu0 0
      %1315 = vmatmul.mubr.bf16.gmra.mxu0 %v1241
      %v1316 = vpop.f32.mrf.mxu0
      %v1317 = vadd.f32 %v1180, %v1316
      %v1318 = vpop.f32.mrf.mxu0
      %v1319 = vpop.f32.mrf.mxu0
      %v1320 = vadd.f32 %v1180, %v1319
      %v1321 = vpop.f32.mrf.mxu0
      %1322 = vmatprep.mubr.bf16.mxu0 0
      %1323 = vmatmul.mubr.bf16.gmra.mxu0 %v1244
      %v1324 = vpop.f32.mrf.mxu0
      %v1325 = vadd.f32 %v1180, %v1324
      %v1326 = vpop.f32.mrf.mxu0
      %v1327 = vpop.f32.mrf.mxu0
      %v1328 = vadd.f32 %v1180, %v1327
      %v1329 = vpop.f32.mrf.mxu0
      %1330 = vdwg.mxu0
      %v1331 = vmax.f32 %v1285, 0.0
      %v1332 = vmax.f32 %v1288, 0.0
      %v1333 = vmax.f32 %v1293, 0.0
      %v1334 = vmax.f32 %v1296, 0.0
      %v1335 = vmax.f32 %v1301, 0.0
      %v1336 = vmax.f32 %v1304, 0.0
      %v1337 = vmax.f32 %v1309, 0.0
      %v1338 = vmax.f32 %v1312, 0.0
      %v1339 = vmax.f32 %v1317, 0.0
      %v1340 = vmax.f32 %v1320, 0.0
      %v1341 = vmax.f32 %v1325, 0.0
      %v1342 = vmax.f32 %v1328, 0.0
      %vm1343 = vcmask 57344
      %1344 = vst.msk [vmem:[#allocation4] sm:$0x1] %vm1343, 0.0
      %1345 = vst.msk [vmem:[#allocation4 + $0x18] sm:$0x1] %vm1343, 0.0
      %1346 = vst.msk [vmem:[#allocation4 + $0x30] sm:$0x1] %vm1343, 0.0
      %1347 = vst.msk [vmem:[#allocation4 + $0x48] sm:$0x1] %vm1343, 0.0
      %1348 = vst.msk [vmem:[#allocation4 + $0x60] sm:$0x1] %vm1343, 0.0
      %1349 = vst.msk [vmem:[#allocation4 + $0x78] sm:$0x1] %vm1343, 0.0
      %1350 = vst.msk [vmem:[#allocation4 + $0x11] sm:$0x1] %vm1343, 0.0
      %1351 = vst.msk [vmem:[#allocation4 + $0x29] sm:$0x1] %vm1343, 0.0
      %1352 = vst.msk [vmem:[#allocation4 + $0x41] sm:$0x1] %vm1343, 0.0
      %1353 = vst.msk [vmem:[#allocation4 + $0x59] sm:$0x1] %vm1343, 0.0
      %1354 = vst.msk [vmem:[#allocation4 + $0x71] sm:$0x1] %vm1343, 0.0
      %1355 = vst.msk [vmem:[#allocation4 + $0x89] sm:$0x1] %vm1343, 0.0
      %vm1356 = vcmask 64512
      %1357 = vst.msk [vmem:[#allocation4 + $0x1] sm:$0xff] %vm1356, %v1331
      %1358 = vst.msk [vmem:[#allocation4 + $0x9] sm:$0xff] %vm1356, %v1332
      %1359 = vst.msk [vmem:[#allocation4 + $0x19] sm:$0xff] %vm1356, %v1333
      %1360 = vst.msk [vmem:[#allocation4 + $0x21] sm:$0xff] %vm1356, %v1334
      %1361 = vst.msk [vmem:[#allocation4 + $0x31] sm:$0xff] %vm1356, %v1335
      %1362 = vst.msk [vmem:[#allocation4 + $0x39] sm:$0xff] %vm1356, %v1336
      %1363 = vst.msk [vmem:[#allocation4 + $0x49] sm:$0xff] %vm1356, %v1337
      %1364 = vst.msk [vmem:[#allocation4 + $0x51] sm:$0xff] %vm1356, %v1338
      %1365 = vst.msk [vmem:[#allocation4 + $0x61] sm:$0xff] %vm1356, %v1339
      %1366 = vst.msk [vmem:[#allocation4 + $0x69] sm:$0xff] %vm1356, %v1340
      %1367 = vst.msk [vmem:[#allocation4 + $0x79] sm:$0xff] %vm1356, %v1341
      %1368 = vst.msk [vmem:[#allocation4 + $0x81] sm:$0xff] %vm1356, %v1342
      // Predicated region
      $region56: #{tpu_custom_call.1} parent=39 // pred_check
        %p1369 = pneg %p291
      $region57: #{tpu_custom_call.1} parent=39 // pred_check_branch
        %1371 = sbr.rel (%p1369) target = $region59
      $region58: #{tpu_custom_call.1} parent=39 // pred_region
        %1372 = vst.msk [vmem:[#allocation4] sm:$0xff] %vm1356, 0.0
        %1373 = vst.msk [vmem:[#allocation4 + $0x8] sm:$0xff] %vm1356, 0.0
        %vm1374 = vcmask 58368
        %1375 = vst.msk [vmem:[#allocation4 + $0x10] sm:$0x3] %vm1374, 0.0
      $region59: #{tpu_custom_call.1} parent=39 // pred_fallthru
        _
      // Predicated region
      $region60: #{tpu_custom_call.1} parent=39 // pred_check
        %p1376 = pneg %p299
      $region61: #{tpu_custom_call.1} parent=39 // pred_check_branch
        %1378 = sbr.rel (%p1376) target = $region63
      $region62: #{tpu_custom_call.1} parent=39 // pred_region
        %s1379 = scalar_lea.vmem [#allocation4], 120
        %1380 = vst.msk [vmem:[%s1379] sm:$0xff] %vm1356, 0.0
        %1381 = vst.msk [vmem:[%s1379 + $0x8] sm:$0xff] %vm1356, 0.0
        %vm1382 = vcmask 58368
        %1383 = vst.msk [vmem:[%s1379 + $0x10] sm:$0x3] %vm1382, 0.0
      $region63: #{tpu_custom_call.1} parent=39 // pred_fallthru
        _
      %v1384 = vld [vmem:[#allocation4] sm:$0xff]
      %v1385 = vld [vmem:[#allocation4 + $0x8] sm:$0xff]
      %v1386 = vld [vmem:[#allocation4 + $0x18] sm:$0xff]
      %v1387 = vld [vmem:[#allocation4 + $0x20] sm:$0xff]
      %v1388 = vld [vmem:[#allocation4 + $0x30] sm:$0xff]
      %v1389 = vld [vmem:[#allocation4 + $0x38] sm:$0xff]
      %v1390 = vld [vmem:[#allocation4 + $0x48] sm:$0xff]
      %v1391 = vld [vmem:[#allocation4 + $0x50] sm:$0xff]
      %v1392 = vpack.c.bf16 %v1385, %v1384
      %v1393 = vpack.c.bf16 %v1387, %v1386
      %v1394 = vpack.c.bf16 %v1389, %v1388
      %v1395 = vpack.c.bf16 %v1391, %v1390
      %v1400 = vunpack.c.l.b16 %v1392
      %v1401 = vunpack.c.h.b16 %v1392
      %v1402 = vunpack.c.l.b16 %v1393
      %v1403 = vunpack.c.h.b16 %v1393
      %v1404 = vunpack.c.l.b16 %v1394
      %v1405 = vunpack.c.h.b16 %v1394
      %v1406 = vunpack.c.l.b16 %v1395
      %v1407 = vunpack.c.h.b16 %v1395
      %v1408 = vpack.c.b16 %v1400, %v1400
      %v1409 = vpack.c.b16 %v1401, %v1401
      %v1410 = vpack.c.b16 %v1402, %v1402
      %v1411 = vpack.c.b16 %v1403, %v1403
      %v1412 = vpack.c.b16 %v1404, %v1404
      %v1413 = vpack.c.b16 %v1405, %v1405
      %v1414 = vpack.c.b16 %v1406, %v1406
      %v1415 = vpack.c.b16 %v1407, %v1407
      %vm1424 = vcmask 60416
      %1425 = vst.msk [vmem:[#allocation5] sm:$0xf] %vm1424, %v1408
      %1426 = vst.msk [vmem:[#allocation5 + $0x4] sm:$0xf] %vm1424, %v1409
      %1427 = vst.msk [vmem:[#allocation5 + $0x8] sm:$0xf] %vm1424, %v1410
      %1428 = vst.msk [vmem:[#allocation5 + $0xc] sm:$0xf] %vm1424, %v1411
      %1429 = vst.msk [vmem:[#allocation5 + $0x10] sm:$0xf] %vm1424, %v1412
      %1430 = vst.msk [vmem:[#allocation5 + $0x14] sm:$0xf] %vm1424, %v1413
      %1431 = vst.msk [vmem:[#allocation5 + $0x18] sm:$0xf] %vm1424, %v1414
      %1432 = vst.msk [vmem:[#allocation5 + $0x1c] sm:$0xf] %vm1424, %v1415
      %v1433 = vld [vmem:[#allocation4 + $0x1] sm:$0xff]
      %v1434 = vld [vmem:[#allocation4 + $0x9] sm:$0xff]
      %v1435 = vld [vmem:[#allocation4 + $0x19] sm:$0xff]
      %v1436 = vld [vmem:[#allocation4 + $0x21] sm:$0xff]
      %v1437 = vld [vmem:[#allocation4 + $0x31] sm:$0xff]
      %v1438 = vld [vmem:[#allocation4 + $0x39] sm:$0xff]
      %v1439 = vld [vmem:[#allocation4 + $0x49] sm:$0xff]
      %v1440 = vld [vmem:[#allocation4 + $0x51] sm:$0xff]
      %v1441 = vpack.c.bf16 %v1434, %v1433
      %v1442 = vpack.c.bf16 %v1436, %v1435
      %v1443 = vpack.c.bf16 %v1438, %v1437
      %v1444 = vpack.c.bf16 %v1440, %v1439
      %v1449 = vunpack.c.l.b16 %v1441
      %v1450 = vunpack.c.h.b16 %v1441
      %v1451 = vunpack.c.l.b16 %v1442
      %v1452 = vunpack.c.h.b16 %v1442
      %v1453 = vunpack.c.l.b16 %v1443
      %v1454 = vunpack.c.h.b16 %v1443
      %v1455 = vunpack.c.l.b16 %v1444
      %v1456 = vunpack.c.h.b16 %v1444
      %v1457 = vpack.c.b16 %v1449, %v1449
      %v1458 = vpack.c.b16 %v1450, %v1450
      %v1459 = vpack.c.b16 %v1451, %v1451
      %v1460 = vpack.c.b16 %v1452, %v1452
      %v1461 = vpack.c.b16 %v1453, %v1453
      %v1462 = vpack.c.b16 %v1454, %v1454
      %v1463 = vpack.c.b16 %v1455, %v1455
      %v1464 = vpack.c.b16 %v1456, %v1456
      %1465 = vrot.lane.b32.xlu0 %v1457, 8
      %v1466 = vpop.permute.xlu0 %1465
      %1467 = vrot.lane.b32.xlu0 %v1458, 8
      %v1468 = vpop.permute.xlu0 %1467
      %1469 = vrot.lane.b32.xlu0 %v1459, 8
      %v1470 = vpop.permute.xlu0 %1469
      %1471 = vrot.lane.b32.xlu0 %v1460, 8
      %v1472 = vpop.permute.xlu0 %1471
      %1473 = vrot.lane.b32.xlu0 %v1461, 8
      %v1474 = vpop.permute.xlu0 %1473
      %1475 = vrot.lane.b32.xlu0 %v1462, 8
      %v1476 = vpop.permute.xlu0 %1475
      %1477 = vrot.lane.b32.xlu0 %v1463, 8
      %v1478 = vpop.permute.xlu0 %1477
      %1479 = vrot.lane.b32.xlu0 %v1464, 8
      %v1480 = vpop.permute.xlu0 %1479
      %vm1489 = vcmask 126016
      %1490 = vst.msk [vmem:[#allocation5] sm:$0xf] %vm1489, %v1466
      %1491 = vst.msk [vmem:[#allocation5 + $0x4] sm:$0xf] %vm1489, %v1468
      %1492 = vst.msk [vmem:[#allocation5 + $0x8] sm:$0xf] %vm1489, %v1470
      %1493 = vst.msk [vmem:[#allocation5 + $0xc] sm:$0xf] %vm1489, %v1472
      %1494 = vst.msk [vmem:[#allocation5 + $0x10] sm:$0xf] %vm1489, %v1474
      %1495 = vst.msk [vmem:[#allocation5 + $0x14] sm:$0xf] %vm1489, %v1476
      %1496 = vst.msk [vmem:[#allocation5 + $0x18] sm:$0xf] %vm1489, %v1478
      %1497 = vst.msk [vmem:[#allocation5 + $0x1c] sm:$0xf] %vm1489, %v1480
      %v1498 = vld [vmem:[#allocation4 + $0x2] sm:$0xff]
      %v1499 = vld [vmem:[#allocation4 + $0xa] sm:$0xff]
      %v1500 = vld [vmem:[#allocation4 + $0x1a] sm:$0xff]
      %v1501 = vld [vmem:[#allocation4 + $0x22] sm:$0xff]
      %v1502 = vld [vmem:[#allocation4 + $0x32] sm:$0xff]
      %v1503 = vld [vmem:[#allocation4 + $0x3a] sm:$0xff]
      %v1504 = vld [vmem:[#allocation4 + $0x4a] sm:$0xff]
      %v1505 = vld [vmem:[#allocation4 + $0x52] sm:$0xff]
      %v1506 = vpack.c.bf16 %v1499, %v1498
      %v1507 = vpack.c.bf16 %v1501, %v1500
      %v1508 = vpack.c.bf16 %v1503, %v1502
      %v1509 = vpack.c.bf16 %v1505, %v1504
      %v1514 = vunpack.c.l.b16 %v1506
      %v1515 = vunpack.c.h.b16 %v1506
      %v1516 = vunpack.c.l.b16 %v1507
      %v1517 = vunpack.c.h.b16 %v1507
      %v1518 = vunpack.c.l.b16 %v1508
      %v1519 = vunpack.c.h.b16 %v1508
      %v1520 = vunpack.c.l.b16 %v1509
      %v1521 = vunpack.c.h.b16 %v1509
      %v1522 = vpack.c.b16 %v1514, %v1514
      %v1523 = vpack.c.b16 %v1515, %v1515
      %v1524 = vpack.c.b16 %v1516, %v1516
      %v1525 = vpack.c.b16 %v1517, %v1517
      %v1526 = vpack.c.b16 %v1518, %v1518
      %v1527 = vpack.c.b16 %v1519, %v1519
      %v1528 = vpack.c.b16 %v1520, %v1520
      %v1529 = vpack.c.b16 %v1521, %v1521
      %1530 = vrot.lane.b32.xlu0 %v1522, 16
      %v1531 = vpop.permute.xlu0 %1530
      %1532 = vrot.lane.b32.xlu0 %v1523, 16
      %v1533 = vpop.permute.xlu0 %1532
      %1534 = vrot.lane.b32.xlu0 %v1524, 16
      %v1535 = vpop.permute.xlu0 %1534
      %1536 = vrot.lane.b32.xlu0 %v1525, 16
      %v1537 = vpop.permute.xlu0 %1536
      %1538 = vrot.lane.b32.xlu0 %v1526, 16
      %v1539 = vpop.permute.xlu0 %1538
      %1540 = vrot.lane.b32.xlu0 %v1527, 16
      %v1541 = vpop.permute.xlu0 %1540
      %1542 = vrot.lane.b32.xlu0 %v1528, 16
      %v1543 = vpop.permute.xlu0 %1542
      %1544 = vrot.lane.b32.xlu0 %v1529, 16
      %v1545 = vpop.permute.xlu0 %1544
      %vm1554 = vcmask 191616
      %1555 = vst.msk [vmem:[#allocation5] sm:$0xf] %vm1554, %v1531
      %1556 = vst.msk [vmem:[#allocation5 + $0x4] sm:$0xf] %vm1554, %v1533
      %1557 = vst.msk [vmem:[#allocation5 + $0x8] sm:$0xf] %vm1554, %v1535
      %1558 = vst.msk [vmem:[#allocation5 + $0xc] sm:$0xf] %vm1554, %v1537
      %1559 = vst.msk [vmem:[#allocation5 + $0x10] sm:$0xf] %vm1554, %v1539
      %1560 = vst.msk [vmem:[#allocation5 + $0x14] sm:$0xf] %vm1554, %v1541
      %1561 = vst.msk [vmem:[#allocation5 + $0x18] sm:$0xf] %vm1554, %v1543
      %1562 = vst.msk [vmem:[#allocation5 + $0x1c] sm:$0xf] %vm1554, %v1545
      %s1563 = scalar_lea.vmem [#allocation4], 24
      %v1564 = vld [vmem:[%s1563] sm:$0xff]
      %v1565 = vld [vmem:[%s1563 + $0x8] sm:$0xff]
      %v1566 = vld [vmem:[%s1563 + $0x18] sm:$0xff]
      %v1567 = vld [vmem:[%s1563 + $0x20] sm:$0xff]
      %v1568 = vld [vmem:[%s1563 + $0x30] sm:$0xff]
      %v1569 = vld [vmem:[%s1563 + $0x38] sm:$0xff]
      %v1570 = vld [vmem:[%s1563 + $0x48] sm:$0xff]
      %v1571 = vld [vmem:[%s1563 + $0x50] sm:$0xff]
      %v1572 = vpack.c.bf16 %v1565, %v1564
      %v1573 = vpack.c.bf16 %v1567, %v1566
      %v1574 = vpack.c.bf16 %v1569, %v1568
      %v1575 = vpack.c.bf16 %v1571, %v1570
      %v1580 = vunpack.c.l.b16 %v1572
      %v1581 = vunpack.c.h.b16 %v1572
      %v1582 = vunpack.c.l.b16 %v1573
      %v1583 = vunpack.c.h.b16 %v1573
      %v1584 = vunpack.c.l.b16 %v1574
      %v1585 = vunpack.c.h.b16 %v1574
      %v1586 = vunpack.c.l.b16 %v1575
      %v1587 = vunpack.c.h.b16 %v1575
      %v1588 = vpack.c.b16 %v1580, %v1580
      %v1589 = vpack.c.b16 %v1581, %v1581
      %v1590 = vpack.c.b16 %v1582, %v1582
      %v1591 = vpack.c.b16 %v1583, %v1583
      %v1592 = vpack.c.b16 %v1584, %v1584
      %v1593 = vpack.c.b16 %v1585, %v1585
      %v1594 = vpack.c.b16 %v1586, %v1586
      %v1595 = vpack.c.b16 %v1587, %v1587
      %1596 = vrot.lane.b32.xlu0 %v1588, 24
      %v1597 = vpop.permute.xlu0 %1596
      %1598 = vrot.lane.b32.xlu0 %v1589, 24
      %v1599 = vpop.permute.xlu0 %1598
      %1600 = vrot.lane.b32.xlu0 %v1590, 24
      %v1601 = vpop.permute.xlu0 %1600
      %1602 = vrot.lane.b32.xlu0 %v1591, 24
      %v1603 = vpop.permute.xlu0 %1602
      %1604 = vrot.lane.b32.xlu0 %v1592, 24
      %v1605 = vpop.permute.xlu0 %1604
      %1606 = vrot.lane.b32.xlu0 %v1593, 24
      %v1607 = vpop.permute.xlu0 %1606
      %1608 = vrot.lane.b32.xlu0 %v1594, 24
      %v1609 = vpop.permute.xlu0 %1608
      %1610 = vrot.lane.b32.xlu0 %v1595, 24
      %v1611 = vpop.permute.xlu0 %1610
      %vm1620 = vcmask 257216
      %1621 = vst.msk [vmem:[#allocation5] sm:$0xf] %vm1620, %v1597
      %1622 = vst.msk [vmem:[#allocation5 + $0x4] sm:$0xf] %vm1620, %v1599
      %1623 = vst.msk [vmem:[#allocation5 + $0x8] sm:$0xf] %vm1620, %v1601
      %1624 = vst.msk [vmem:[#allocation5 + $0xc] sm:$0xf] %vm1620, %v1603
      %1625 = vst.msk [vmem:[#allocation5 + $0x10] sm:$0xf] %vm1620, %v1605
      %1626 = vst.msk [vmem:[#allocation5 + $0x14] sm:$0xf] %vm1620, %v1607
      %1627 = vst.msk [vmem:[#allocation5 + $0x18] sm:$0xf] %vm1620, %v1609
      %1628 = vst.msk [vmem:[#allocation5 + $0x1c] sm:$0xf] %vm1620, %v1611
      %v1629 = vld [vmem:[%s1563 + $0x1] sm:$0xff]
      %v1630 = vld [vmem:[%s1563 + $0x9] sm:$0xff]
      %v1631 = vld [vmem:[%s1563 + $0x19] sm:$0xff]
      %v1632 = vld [vmem:[%s1563 + $0x21] sm:$0xff]
      %v1633 = vld [vmem:[%s1563 + $0x31] sm:$0xff]
      %v1634 = vld [vmem:[%s1563 + $0x39] sm:$0xff]
      %v1635 = vld [vmem:[%s1563 + $0x49] sm:$0xff]
      %v1636 = vld [vmem:[%s1563 + $0x51] sm:$0xff]
      %v1637 = vpack.c.bf16 %v1630, %v1629
      %v1638 = vpack.c.bf16 %v1632, %v1631
      %v1639 = vpack.c.bf16 %v1634, %v1633
      %v1640 = vpack.c.bf16 %v1636, %v1635
      %v1645 = vunpack.c.l.b16 %v1637
      %v1646 = vunpack.c.h.b16 %v1637
      %v1647 = vunpack.c.l.b16 %v1638
      %v1648 = vunpack.c.h.b16 %v1638
      %v1649 = vunpack.c.l.b16 %v1639
      %v1650 = vunpack.c.h.b16 %v1639
      %v1651 = vunpack.c.l.b16 %v1640
      %v1652 = vunpack.c.h.b16 %v1640
      %v1653 = vpack.c.b16 %v1645, %v1645
      %v1654 = vpack.c.b16 %v1646, %v1646
      %v1655 = vpack.c.b16 %v1647, %v1647
      %v1656 = vpack.c.b16 %v1648, %v1648
      %v1657 = vpack.c.b16 %v1649, %v1649
      %v1658 = vpack.c.b16 %v1650, %v1650
      %v1659 = vpack.c.b16 %v1651, %v1651
      %v1660 = vpack.c.b16 %v1652, %v1652
      %1661 = vrot.lane.b32.xlu0 %v1653, 32
      %v1662 = vpop.permute.xlu0 %1661
      %1663 = vrot.lane.b32.xlu0 %v1654, 32
      %v1664 = vpop.permute.xlu0 %1663
      %1665 = vrot.lane.b32.xlu0 %v1655, 32
      %v1666 = vpop.permute.xlu0 %1665
      %1667 = vrot.lane.b32.xlu0 %v1656, 32
      %v1668 = vpop.permute.xlu0 %1667
      %1669 = vrot.lane.b32.xlu0 %v1657, 32
      %v1670 = vpop.permute.xlu0 %1669
      %1671 = vrot.lane.b32.xlu0 %v1658, 32
      %v1672 = vpop.permute.xlu0 %1671
      %1673 = vrot.lane.b32.xlu0 %v1659, 32
      %v1674 = vpop.permute.xlu0 %1673
      %1675 = vrot.lane.b32.xlu0 %v1660, 32
      %v1676 = vpop.permute.xlu0 %1675
      %vm1685 = vcmask 322816
      %1686 = vst.msk [vmem:[#allocation5] sm:$0xf] %vm1685, %v1662
      %1687 = vst.msk [vmem:[#allocation5 + $0x4] sm:$0xf] %vm1685, %v1664
      %1688 = vst.msk [vmem:[#allocation5 + $0x8] sm:$0xf] %vm1685, %v1666
      %1689 = vst.msk [vmem:[#allocation5 + $0xc] sm:$0xf] %vm1685, %v1668
      %1690 = vst.msk [vmem:[#allocation5 + $0x10] sm:$0xf] %vm1685, %v1670
      %1691 = vst.msk [vmem:[#allocation5 + $0x14] sm:$0xf] %vm1685, %v1672
      %1692 = vst.msk [vmem:[#allocation5 + $0x18] sm:$0xf] %vm1685, %v1674
      %1693 = vst.msk [vmem:[#allocation5 + $0x1c] sm:$0xf] %vm1685, %v1676
      %v1694 = vld [vmem:[%s1563 + $0x2] sm:$0xff]
      %v1695 = vld [vmem:[%s1563 + $0xa] sm:$0xff]
      %v1696 = vld [vmem:[%s1563 + $0x1a] sm:$0xff]
      %v1697 = vld [vmem:[%s1563 + $0x22] sm:$0xff]
      %v1698 = vld [vmem:[%s1563 + $0x32] sm:$0xff]
      %v1699 = vld [vmem:[%s1563 + $0x3a] sm:$0xff]
      %v1700 = vld [vmem:[%s1563 + $0x4a] sm:$0xff]
      %v1701 = vld [vmem:[%s1563 + $0x52] sm:$0xff]
      %v1702 = vpack.c.bf16 %v1695, %v1694
      %v1703 = vpack.c.bf16 %v1697, %v1696
      %v1704 = vpack.c.bf16 %v1699, %v1698
      %v1705 = vpack.c.bf16 %v1701, %v1700
      %v1710 = vunpack.c.l.b16 %v1702
      %v1711 = vunpack.c.h.b16 %v1702
      %v1712 = vunpack.c.l.b16 %v1703
      %v1713 = vunpack.c.h.b16 %v1703
      %v1714 = vunpack.c.l.b16 %v1704
      %v1715 = vunpack.c.h.b16 %v1704
      %v1716 = vunpack.c.l.b16 %v1705
      %v1717 = vunpack.c.h.b16 %v1705
      %v1718 = vpack.c.b16 %v1710, %v1710
      %v1719 = vpack.c.b16 %v1711, %v1711
      %v1720 = vpack.c.b16 %v1712, %v1712
      %v1721 = vpack.c.b16 %v1713, %v1713
      %v1722 = vpack.c.b16 %v1714, %v1714
      %v1723 = vpack.c.b16 %v1715, %v1715
      %v1724 = vpack.c.b16 %v1716, %v1716
      %v1725 = vpack.c.b16 %v1717, %v1717
      %1726 = vrot.lane.b32.xlu0 %v1718, 40
      %v1727 = vpop.permute.xlu0 %1726
      %1728 = vrot.lane.b32.xlu0 %v1719, 40
      %v1729 = vpop.permute.xlu0 %1728
      %1730 = vrot.lane.b32.xlu0 %v1720, 40
      %v1731 = vpop.permute.xlu0 %1730
      %1732 = vrot.lane.b32.xlu0 %v1721, 40
      %v1733 = vpop.permute.xlu0 %1732
      %1734 = vrot.lane.b32.xlu0 %v1722, 40
      %v1735 = vpop.permute.xlu0 %1734
      %1736 = vrot.lane.b32.xlu0 %v1723, 40
      %v1737 = vpop.permute.xlu0 %1736
      %1738 = vrot.lane.b32.xlu0 %v1724, 40
      %v1739 = vpop.permute.xlu0 %1738
      %1740 = vrot.lane.b32.xlu0 %v1725, 40
      %v1741 = vpop.permute.xlu0 %1740
      %vm1750 = vcmask 388416
      %1751 = vst.msk [vmem:[#allocation5] sm:$0xf] %vm1750, %v1727
      %1752 = vst.msk [vmem:[#allocation5 + $0x4] sm:$0xf] %vm1750, %v1729
      %1753 = vst.msk [vmem:[#allocation5 + $0x8] sm:$0xf] %vm1750, %v1731
      %1754 = vst.msk [vmem:[#allocation5 + $0xc] sm:$0xf] %vm1750, %v1733
      %1755 = vst.msk [vmem:[#allocation5 + $0x10] sm:$0xf] %vm1750, %v1735
      %1756 = vst.msk [vmem:[#allocation5 + $0x14] sm:$0xf] %vm1750, %v1737
      %1757 = vst.msk [vmem:[#allocation5 + $0x18] sm:$0xf] %vm1750, %v1739
      %1758 = vst.msk [vmem:[#allocation5 + $0x1c] sm:$0xf] %vm1750, %v1741
      %s1759 = scalar_lea.vmem [#allocation4], 48
      %v1760 = vld [vmem:[%s1759] sm:$0xff]
      %v1761 = vld [vmem:[%s1759 + $0x8] sm:$0xff]
      %v1762 = vld [vmem:[%s1759 + $0x18] sm:$0xff]
      %v1763 = vld [vmem:[%s1759 + $0x20] sm:$0xff]
      %v1764 = vld [vmem:[%s1759 + $0x30] sm:$0xff]
      %v1765 = vld [vmem:[%s1759 + $0x38] sm:$0xff]
      %v1766 = vld [vmem:[%s1759 + $0x48] sm:$0xff]
      %v1767 = vld [vmem:[%s1759 + $0x50] sm:$0xff]
      %v1768 = vpack.c.bf16 %v1761, %v1760
      %v1769 = vpack.c.bf16 %v1763, %v1762
      %v1770 = vpack.c.bf16 %v1765, %v1764
      %v1771 = vpack.c.bf16 %v1767, %v1766
      %v1776 = vunpack.c.l.b16 %v1768
      %v1777 = vunpack.c.h.b16 %v1768
      %v1778 = vunpack.c.l.b16 %v1769
      %v1779 = vunpack.c.h.b16 %v1769
      %v1780 = vunpack.c.l.b16 %v1770
      %v1781 = vunpack.c.h.b16 %v1770
      %v1782 = vunpack.c.l.b16 %v1771
      %v1783 = vunpack.c.h.b16 %v1771
      %v1784 = vpack.c.b16 %v1776, %v1776
      %v1785 = vpack.c.b16 %v1777, %v1777
      %v1786 = vpack.c.b16 %v1778, %v1778
      %v1787 = vpack.c.b16 %v1779, %v1779
      %v1788 = vpack.c.b16 %v1780, %v1780
      %v1789 = vpack.c.b16 %v1781, %v1781
      %v1790 = vpack.c.b16 %v1782, %v1782
      %v1791 = vpack.c.b16 %v1783, %v1783
      %1792 = vrot.lane.b32.xlu0 %v1784, 48
      %v1793 = vpop.permute.xlu0 %1792
      %1794 = vrot.lane.b32.xlu0 %v1785, 48
      %v1795 = vpop.permute.xlu0 %1794
      %1796 = vrot.lane.b32.xlu0 %v1786, 48
      %v1797 = vpop.permute.xlu0 %1796
      %1798 = vrot.lane.b32.xlu0 %v1787, 48
      %v1799 = vpop.permute.xlu0 %1798
      %1800 = vrot.lane.b32.xlu0 %v1788, 48
      %v1801 = vpop.permute.xlu0 %1800
      %1802 = vrot.lane.b32.xlu0 %v1789, 48
      %v1803 = vpop.permute.xlu0 %1802
      %1804 = vrot.lane.b32.xlu0 %v1790, 48
      %v1805 = vpop.permute.xlu0 %1804
      %1806 = vrot.lane.b32.xlu0 %v1791, 48
      %v1807 = vpop.permute.xlu0 %1806
      %vm1816 = vcmask 454016
      %1817 = vst.msk [vmem:[#allocation5] sm:$0xf] %vm1816, %v1793
      %1818 = vst.msk [vmem:[#allocation5 + $0x4] sm:$0xf] %vm1816, %v1795
      %1819 = vst.msk [vmem:[#allocation5 + $0x8] sm:$0xf] %vm1816, %v1797
      %1820 = vst.msk [vmem:[#allocation5 + $0xc] sm:$0xf] %vm1816, %v1799
      %1821 = vst.msk [vmem:[#allocation5 + $0x10] sm:$0xf] %vm1816, %v1801
      %1822 = vst.msk [vmem:[#allocation5 + $0x14] sm:$0xf] %vm1816, %v1803
      %1823 = vst.msk [vmem:[#allocation5 + $0x18] sm:$0xf] %vm1816, %v1805
      %1824 = vst.msk [vmem:[#allocation5 + $0x1c] sm:$0xf] %vm1816, %v1807
      %v1825 = vld [vmem:[%s1759 + $0x1] sm:$0xff]
      %v1826 = vld [vmem:[%s1759 + $0x9] sm:$0xff]
      %v1827 = vld [vmem:[%s1759 + $0x19] sm:$0xff]
      %v1828 = vld [vmem:[%s1759 + $0x21] sm:$0xff]
      %v1829 = vld [vmem:[%s1759 + $0x31] sm:$0xff]
      %v1830 = vld [vmem:[%s1759 + $0x39] sm:$0xff]
      %v1831 = vld [vmem:[%s1759 + $0x49] sm:$0xff]
      %v1832 = vld [vmem:[%s1759 + $0x51] sm:$0xff]
      %v1833 = vpack.c.bf16 %v1826, %v1825
      %v1834 = vpack.c.bf16 %v1828, %v1827
      %v1835 = vpack.c.bf16 %v1830, %v1829
      %v1836 = vpack.c.bf16 %v1832, %v1831
      %v1841 = vunpack.c.l.b16 %v1833
      %v1842 = vunpack.c.h.b16 %v1833
      %v1843 = vunpack.c.l.b16 %v1834
      %v1844 = vunpack.c.h.b16 %v1834
      %v1845 = vunpack.c.l.b16 %v1835
      %v1846 = vunpack.c.h.b16 %v1835
      %v1847 = vunpack.c.l.b16 %v1836
      %v1848 = vunpack.c.h.b16 %v1836
      %v1849 = vpack.c.b16 %v1841, %v1841
      %v1850 = vpack.c.b16 %v1842, %v1842
      %v1851 = vpack.c.b16 %v1843, %v1843
      %v1852 = vpack.c.b16 %v1844, %v1844
      %v1853 = vpack.c.b16 %v1845, %v1845
      %v1854 = vpack.c.b16 %v1846, %v1846
      %v1855 = vpack.c.b16 %v1847, %v1847
      %v1856 = vpack.c.b16 %v1848, %v1848
      %1857 = vrot.lane.b32.xlu0 %v1849, 56
      %v1858 = vpop.permute.xlu0 %1857
      %1859 = vrot.lane.b32.xlu0 %v1850, 56
      %v1860 = vpop.permute.xlu0 %1859
      %1861 = vrot.lane.b32.xlu0 %v1851, 56
      %v1862 = vpop.permute.xlu0 %1861
      %1863 = vrot.lane.b32.xlu0 %v1852, 56
      %v1864 = vpop.permute.xlu0 %1863
      %1865 = vrot.lane.b32.xlu0 %v1853, 56
      %v1866 = vpop.permute.xlu0 %1865
      %1867 = vrot.lane.b32.xlu0 %v1854, 56
      %v1868 = vpop.permute.xlu0 %1867
      %1869 = vrot.lane.b32.xlu0 %v1855, 56
      %v1870 = vpop.permute.xlu0 %1869
      %1871 = vrot.lane.b32.xlu0 %v1856, 56
      %v1872 = vpop.permute.xlu0 %1871
      %vm1881 = vcmask 519616
      %1882 = vst.msk [vmem:[#allocation5] sm:$0xf] %vm1881, %v1858
      %1883 = vst.msk [vmem:[#allocation5 + $0x4] sm:$0xf] %vm1881, %v1860
      %1884 = vst.msk [vmem:[#allocation5 + $0x8] sm:$0xf] %vm1881, %v1862
      %1885 = vst.msk [vmem:[#allocation5 + $0xc] sm:$0xf] %vm1881, %v1864
      %1886 = vst.msk [vmem:[#allocation5 + $0x10] sm:$0xf] %vm1881, %v1866
      %1887 = vst.msk [vmem:[#allocation5 + $0x14] sm:$0xf] %vm1881, %v1868
      %1888 = vst.msk [vmem:[#allocation5 + $0x18] sm:$0xf] %vm1881, %v1870
      %1889 = vst.msk [vmem:[#allocation5 + $0x1c] sm:$0xf] %vm1881, %v1872
      %v1890 = vld [vmem:[%s1759 + $0x2] sm:$0xff]
      %v1891 = vld [vmem:[%s1759 + $0xa] sm:$0xff]
      %v1892 = vld [vmem:[%s1759 + $0x1a] sm:$0xff]
      %v1893 = vld [vmem:[%s1759 + $0x22] sm:$0xff]
      %v1894 = vld [vmem:[%s1759 + $0x32] sm:$0xff]
      %v1895 = vld [vmem:[%s1759 + $0x3a] sm:$0xff]
      %v1896 = vld [vmem:[%s1759 + $0x4a] sm:$0xff]
      %v1897 = vld [vmem:[%s1759 + $0x52] sm:$0xff]
      %v1898 = vpack.c.bf16 %v1891, %v1890
      %v1899 = vpack.c.bf16 %v1893, %v1892
      %v1900 = vpack.c.bf16 %v1895, %v1894
      %v1901 = vpack.c.bf16 %v1897, %v1896
      %v1906 = vunpack.c.l.b16 %v1898
      %v1907 = vunpack.c.h.b16 %v1898
      %v1908 = vunpack.c.l.b16 %v1899
      %v1909 = vunpack.c.h.b16 %v1899
      %v1910 = vunpack.c.l.b16 %v1900
      %v1911 = vunpack.c.h.b16 %v1900
      %v1912 = vunpack.c.l.b16 %v1901
      %v1913 = vunpack.c.h.b16 %v1901
      %v1914 = vpack.c.b16 %v1906, %v1906
      %v1915 = vpack.c.b16 %v1907, %v1907
      %v1916 = vpack.c.b16 %v1908, %v1908
      %v1917 = vpack.c.b16 %v1909, %v1909
      %v1918 = vpack.c.b16 %v1910, %v1910
      %v1919 = vpack.c.b16 %v1911, %v1911
      %v1920 = vpack.c.b16 %v1912, %v1912
      %v1921 = vpack.c.b16 %v1913, %v1913
      %1922 = vrot.lane.b32.xlu0 %v1914, 64
      %v1923 = vpop.permute.xlu0 %1922
      %1924 = vrot.lane.b32.xlu0 %v1915, 64
      %v1925 = vpop.permute.xlu0 %1924
      %1926 = vrot.lane.b32.xlu0 %v1916, 64
      %v1927 = vpop.permute.xlu0 %1926
      %1928 = vrot.lane.b32.xlu0 %v1917, 64
      %v1929 = vpop.permute.xlu0 %1928
      %1930 = vrot.lane.b32.xlu0 %v1918, 64
      %v1931 = vpop.permute.xlu0 %1930
      %1932 = vrot.lane.b32.xlu0 %v1919, 64
      %v1933 = vpop.permute.xlu0 %1932
      %1934 = vrot.lane.b32.xlu0 %v1920, 64
      %v1935 = vpop.permute.xlu0 %1934
      %1936 = vrot.lane.b32.xlu0 %v1921, 64
      %v1937 = vpop.permute.xlu0 %1936
      %vm1946 = vcmask 585216
      %1947 = vst.msk [vmem:[#allocation5] sm:$0xf] %vm1946, %v1923
      %1948 = vst.msk [vmem:[#allocation5 + $0x4] sm:$0xf] %vm1946, %v1925
      %1949 = vst.msk [vmem:[#allocation5 + $0x8] sm:$0xf] %vm1946, %v1927
      %1950 = vst.msk [vmem:[#allocation5 + $0xc] sm:$0xf] %vm1946, %v1929
      %1951 = vst.msk [vmem:[#allocation5 + $0x10] sm:$0xf] %vm1946, %v1931
      %1952 = vst.msk [vmem:[#allocation5 + $0x14] sm:$0xf] %vm1946, %v1933
      %1953 = vst.msk [vmem:[#allocation5 + $0x18] sm:$0xf] %vm1946, %v1935
      %1954 = vst.msk [vmem:[#allocation5 + $0x1c] sm:$0xf] %vm1946, %v1937
      %v1955 = vld [vmem:[#allocation5] sm:$0xf]
      %v1956 = vld [vmem:[#allocation5 + $0x4] sm:$0xf]
      %v1957 = vld [vmem:[#allocation5 + $0x8] sm:$0xf]
      %v1958 = vld [vmem:[#allocation5 + $0xc] sm:$0xf]
      %v1959 = vld [vmem:[#allocation5 + $0x10] sm:$0xf]
      %v1960 = vld [vmem:[#allocation5 + $0x14] sm:$0xf]
      %v1961 = vld [vmem:[#allocation5 + $0x18] sm:$0xf]
      %v1962 = vld [vmem:[#allocation5 + $0x1c] sm:$0xf]
      %v1963 = vld [vmem:[%s3] sm:$0xf]
      %v1964 = vld [vmem:[%s3 + $0x4] sm:$0xf]
      %v1965 = vld [vmem:[%s3 + $0x8] sm:$0xf]
      %v1966 = vld [vmem:[%s3 + $0xc] sm:$0xf]
      %v1967 = vld [vmem:[%s3 + $0x10] sm:$0xf]
      %v1968 = vld [vmem:[%s3 + $0x14] sm:$0xf]
      %v1969 = vld [vmem:[%s3 + $0x18] sm:$0xf]
      %v1970 = vld [vmem:[%s3 + $0x1c] sm:$0xf]
      %v1971 = vld [vmem:[%s3 + $0x20] sm:$0xf]
      %v1972 = vld [vmem:[%s4] sm:$0x1]
      %v1974 = vlaneseq
      %v1975 = vshrl.u32 %v1974, 7
      %v1976 = vsub.s32 0, %v1975
      %v1977 = vrot.slane %v1972, %v1976
      %v1987 = vunpack.c.l.b16 %v1955
      %v1988 = vunpack.c.l.b16 %v1956
      %v1989 = vunpack.c.l.b16 %v1957
      %v1990 = vunpack.c.l.b16 %v1958
      %v1991 = vunpack.c.l.b16 %v1959
      %v1992 = vunpack.c.l.b16 %v1960
      %v1993 = vunpack.c.l.b16 %v1961
      %v1994 = vunpack.c.l.b16 %v1962
      %v1995 = vpack.c.b16 %v1988, %v1987
      %v1996 = vpack.c.b16 %v1990, %v1989
      %v1997 = vpack.c.b16 %v1992, %v1991
      %v1998 = vpack.c.b16 %v1994, %v1993
      %v2008 = vunpack.c.l.b16 %v1963
      %v2009 = vunpack.c.l.b16 %v1964
      %v2010 = vunpack.c.l.b16 %v1965
      %v2011 = vunpack.c.l.b16 %v1966
      %v2012 = vunpack.c.l.b16 %v1967
      %v2013 = vunpack.c.l.b16 %v1968
      %v2014 = vunpack.c.l.b16 %v1969
      %v2015 = vunpack.c.l.b16 %v1970
      %v2016 = vunpack.c.l.b16 %v1971
      %v2017 = vpack.c.b16 %v2009, %v2008
      %v2018 = vpack.c.b16 %v2011, %v2010
      %v2019 = vpack.c.b16 %v2013, %v2012
      %v2020 = vpack.c.b16 %v2015, %v2014
      %v2021 = vpack.c.b16 %v2016, %v2016
      %vm2026 = vcmask 588800
      %v2028 = vsel %vm2026, %v1995, 0
      %v2031 = vsel %vm2026, %v1996, 0
      %v2034 = vsel %vm2026, %v1997, 0
      %v2037 = vsel %vm2026, %v1998, 0
      %vm2039 = vcmask 1043456
      %v2041 = vsel %vm2039, %v2021, 0
      %2043 = vmatprep.subr.bf16.mxu0 0
      %2044 = vmatpush1.bf16.msra.mxu0 0
      %2045 = vmatprep.subr.bf16.mxu0 0
      %2046 = vmatpush1.bf16.msra.mxu0 0
      %2047 = vmatprep.subr.bf16.mxu0 0
      %2048 = vmatpush1.bf16.msra.mxu0 0
      %2049 = vmatprep.subr.bf16.mxu0 0
      %2050 = vmatpush1.bf16.msra.mxu0 %v2041
      %2051 = vmatprep.subr.bf16.mxu0 0
      %2052 = vmatpush1.bf16.msra.mxu0 %v2020
      %2053 = vmatprep.subr.bf16.mxu0 0
      %2054 = vmatpush1.bf16.msra.mxu0 %v2019
      %2055 = vmatprep.subr.bf16.mxu0 0
      %2056 = vmatpush1.bf16.msra.mxu0 %v2018
      %2057 = vmatprep.subr.bf16.mxu0 0
      %2058 = vmatpush1.bf16.msra.mxu0 %v2017
      %2059 = vmatprep.subr.bf16.mxu0 0
      %2060 = vmatpush2.bf16.msra.mxu0 0
      %2061 = vmatprep.subr.bf16.mxu0 0
      %2062 = vmatpush2.bf16.msra.mxu0 0
      %2063 = vmatprep.subr.bf16.mxu0 0
      %2064 = vmatpush2.bf16.msra.mxu0 0
      %2065 = vmatprep.subr.bf16.mxu0 0
      %2066 = vmatpush2.bf16.msra.mxu0 0
      %2067 = vmatprep.subr.bf16.mxu0 0
      %2068 = vmatpush2.bf16.msra.mxu0 0
      %2069 = vmatprep.subr.bf16.mxu0 0
      %2070 = vmatpush2.bf16.msra.mxu0 0
      %2071 = vmatprep.subr.bf16.mxu0 0
      %2072 = vmatpush2.bf16.msra.mxu0 0
      %2073 = vmatprep.subr.bf16.mxu0 0
      %2074 = vmatpush2.bf16.msra.mxu0 0
      %2075 = vmatprep.mubr.bf16.mxu0 0
      %2076 = vmatmul.mubr.bf16.gmra.mxu0 %v2028
      %v2077 = vpop.f32.mrf.mxu0
      %v2078 = vadd.f32 %v1977, %v2077
      %v2079 = vpop.f32.mrf.mxu0
      %v2080 = vpop.f32.mrf.mxu0
      %v2081 = vadd.f32 %v1977, %v2080
      %v2082 = vpop.f32.mrf.mxu0
      %2083 = vmatprep.mubr.bf16.mxu0 0
      %2084 = vmatmul.mubr.bf16.gmra.mxu0 %v2031
      %v2085 = vpop.f32.mrf.mxu0
      %v2086 = vadd.f32 %v1977, %v2085
      %v2087 = vpop.f32.mrf.mxu0
      %v2088 = vpop.f32.mrf.mxu0
      %v2089 = vadd.f32 %v1977, %v2088
      %v2090 = vpop.f32.mrf.mxu0
      %2091 = vmatprep.mubr.bf16.mxu0 0
      %2092 = vmatmul.mubr.bf16.gmra.mxu0 %v2034
      %v2093 = vpop.f32.mrf.mxu0
      %v2094 = vadd.f32 %v1977, %v2093
      %v2095 = vpop.f32.mrf.mxu0
      %v2096 = vpop.f32.mrf.mxu0
      %v2097 = vadd.f32 %v1977, %v2096
      %v2098 = vpop.f32.mrf.mxu0
      %2099 = vmatprep.mubr.bf16.mxu0 0
      %2100 = vmatmul.mubr.bf16.gmra.mxu0 %v2037
      %v2101 = vpop.f32.mrf.mxu0
      %v2102 = vadd.f32 %v1977, %v2101
      %v2103 = vpop.f32.mrf.mxu0
      %v2104 = vpop.f32.mrf.mxu0
      %v2105 = vadd.f32 %v1977, %v2104
      %v2106 = vpop.f32.mrf.mxu0
      %2107 = vdwg.mxu0
      %v2108 = vmax.f32 %v2078, 0.0
      %v2109 = vmax.f32 %v2081, 0.0
      %v2110 = vmax.f32 %v2086, 0.0
      %v2111 = vmax.f32 %v2089, 0.0
      %v2112 = vmax.f32 %v2094, 0.0
      %v2113 = vmax.f32 %v2097, 0.0
      %v2114 = vmax.f32 %v2102, 0.0
      %v2115 = vmax.f32 %v2105, 0.0
      %2116 = vst.msk [vmem:[%s246] sm:$0xff] %vm1356, %v2108
      %2117 = vst.msk [vmem:[%s246 + $0x8] sm:$0xff] %vm1356, %v2109
      %2118 = vst.msk [vmem:[%s246 + $0x10] sm:$0xff] %vm1356, %v2110
      %2119 = vst.msk [vmem:[%s246 + $0x18] sm:$0xff] %vm1356, %v2111
      %2120 = vst.msk [vmem:[%s246 + $0x20] sm:$0xff] %vm1356, %v2112
      %2121 = vst.msk [vmem:[%s246 + $0x28] sm:$0xff] %vm1356, %v2113
      %2122 = vst.msk [vmem:[%s246 + $0x30] sm:$0xff] %vm1356, %v2114
      %2123 = vst.msk [vmem:[%s246 + $0x38] sm:$0xff] %vm1356, %v2115
      %s2124 = smul.u32 8, %s21
      %p2125 = scmp.lt.s32.totalorder %s20, 1
      %s2126 = scalar_select %p2125, %s20, 1
      %p2127 = scmp.lt.s32.totalorder %s2124, 31
      %s2128 = scalar_select %p2127, %s2124, 31
      %s2129 = smul.addr %s2126, 32
      %s2130 = sadd.s32 %s2128, %s2129
      %s2131 = smul.addr %s2130, 8
      %s2132 = scalar_lea.vmem %s5, %s2131
      // Predicated region
      $region64: #{tpu_custom_call.1} parent=39 // pred_check
        %p2133 = pneg %p158
      $region65: #{tpu_custom_call.1} parent=39 // pred_check_branch
        %2135 = sbr.rel (%p2133) target = $region67
      $region66: #{tpu_custom_call.1} parent=39 // pred_region
        %s2136 = smul.u32 8, %s21
      $region67: #{tpu_custom_call.1} parent=39 // pred_fallthru
        _
    $region40: #{tpu_custom_call.1} parent=5 // pred_fallthru
      _
    %p2137 = scmp.le.s32.totalorder 2, %s11
    // Predicated region
    $region68: #{tpu_custom_call.1} parent=5 // pred_check
      %p2138 = pneg %p2137
    $region69: #{tpu_custom_call.1} parent=5 // pred_check_branch
      %2140 = sbr.rel (%p2138) target = $region71
    $region70: #{tpu_custom_call.1} parent=5 // pred_region
      %s2141 = ssub.s32 %s11, 2
      // Predicated region
      $region72: #{tpu_custom_call.1} parent=70 // pred_check
        %p2142 = pneg %p164
      $region73: #{tpu_custom_call.1} parent=70 // pred_check_branch
        %2144 = sbr.rel (%p2142) target = $region75
      $region74: #{tpu_custom_call.1} parent=70 // pred_region
        %s2145 = smul.u32 8, %s23
        %p2146 = scmp.lt.s32.totalorder %s22, 1
        %s2147 = scalar_select %p2146, %s22, 1
        %p2148 = scmp.lt.s32.totalorder %s2145, 31
        %s2149 = scalar_select %p2148, %s2145, 31
        %s2150 = smul.addr %s2147, 32
        %s2151 = sadd.s32 %s2149, %s2150
        %s2152 = smul.addr %s2151, 8
        %s2153 = scalar_lea.vmem %s5, %s2152
      $region75: #{tpu_custom_call.1} parent=70 // pred_fallthru
        _
    $region71: #{tpu_custom_call.1} parent=5 // pred_fallthru
      _
  $region6: #{tpu_custom_call.1} parent=0 // loop_footer
    %s15 = sadd.s32 1, %s11
  $region7: #{tpu_custom_call.1} parent=0 // loop_footer_branch
    %10 = sbr.rel target = $region3
  $region8: #{tpu_custom_call.1} parent=0 // loop_exit
    _

</llo_original>
